<compile_context>
chip_gen: v6e
topology: v6e:2x2x1
jax: 0.10.0
libtpu: 0.0.40
codegen_flags: <defaults>
</compile_context>

<pallas_src>
import functools
import math

import jax
import jax.numpy as jnp
from jax.experimental import pallas as pl
from jax.experimental.pallas import tpu as pltpu

NEG_SLOPE = 0.01   # nn.LeakyReLU / F.leaky_relu default
BN_EPS = 1e-5      # nn.BatchNorm1d default


def _rup(n, m=128):
    return ((n + m - 1) // m) * m


# ----------------------------------------------------------------------------- kernel
def ae_dbn_kernel(x_ref,
                  w1, b1, w2, b2, w3, b3, w4, b4,     # encoder (BN+bias folded)
                  w5, b5, w6, b6, w7, b7, w8, b8,     # decoder (BN+bias folded)
                  out_ref, z_ref, *, compute_dtype):
    f32 = jnp.float32
    bf16 = jnp.bfloat16

    def layer(a, w_ref, b_ref, act):
        # bf16 MXU operands, f32 accumulation; bias/LeakyReLU in `compute_dtype`.
        acc = jnp.dot(a.astype(bf16), w_ref[...], preferred_element_type=f32)
        h = acc.astype(compute_dtype) + b_ref[...]
        if act:
            h = jnp.maximum(h, NEG_SLOPE * h)   # LeakyReLU as mul+max
        return h

    x = x_ref[...]

    # ---- encoder (bn5/bn1..bn4 + biases already folded into w/b) ----
    h = layer(x, w1, b1, True)
    h = layer(h, w2, b2, True)
    h = layer(h, w3, b3, True)
    z = layer(h, w4, b4, False)           # = bn4(en4(...)), the returned latent

    # ---- decoder (bn4 at entry / bn3..bn1 between layers / bn5 at exit folded) ----
    d = layer(z, w5, b5, True)
    d = layer(d, w6, b6, True)
    d = layer(d, w7, b7, True)
    out = layer(d, w8, b8, False)

    z_ref[...] = z.astype(z_ref.dtype)
    out_ref[...] = out.astype(out_ref.dtype)


# ----------------------------------------------------------------------------- params
def init_params(key, n_features, z_dim):
    """PyTorch-like init.  Linears stored transposed, i.e. (in_features, out_features).
    BatchNorms get non-trivial (gamma, beta, running_mean, running_var) so the BN path
    is actually exercised."""
    lin_dims = [
        (n_features, 200), (200, 100), (100, 50), (50, z_dim),   # en1..en4
        (z_dim, 50), (50, 100), (100, 200), (200, n_features),   # de1..de4
    ]
    linears = []
    for fan_in, fan_out in lin_dims:
        key, kw, kb = jax.random.split(key, 3)
        bound = 1.0 / math.sqrt(fan_in)
        w = jax.random.uniform(kw, (fan_in, fan_out), jnp.float32, -bound, bound)
        b = jax.random.uniform(kb, (fan_out,), jnp.float32, -bound, bound)
        linears.append((w, b))

    bn_dims = [200, 100, 50, z_dim, n_features]   # bn1, bn2, bn3, bn4, bn5
    bns = []
    for d in bn_dims:
        key, kg, kb2, km, kv = jax.random.split(key, 5)
        gamma = jax.random.uniform(kg, (d,), jnp.float32, 0.5, 1.5)
        beta = jax.random.uniform(kb2, (d,), jnp.float32, -0.1, 0.1)
        mean = 0.1 * jax.random.normal(km, (d,), jnp.float32)
        var = jax.random.uniform(kv, (d,), jnp.float32, 0.5, 1.5)
        bns.append((gamma, beta, mean, var))
    return linears, bns


def _bn_affine(gamma, beta, mean, var):
    scale = gamma / jnp.sqrt(var + BN_EPS)
    shift = beta - mean * scale
    return scale, shift


def prepare_kernel_params(linears, bns, compute_dtype):
    """Fold every BatchNorm affine + linear bias into 8 weights / 8 bias rows (in f32),
    then zero-pad feature dims to multiples of 128 and cast weights to bf16 and biases
    to the kernel's elementwise compute dtype."""
    (s1, t1), (s2, t2), (s3, t3), (s4, t4), (s5, t5) = [_bn_affine(*bn) for bn in bns]
    (w1, b1), (w2, b2), (w3, b3), (w4, b4), \
        (w5, b5), (w6, b6), (w7, b7), (w8, b8) = linears

    # encoder: lrelu((bn_in(x) @ W + b) * s_out + t_out)
    fw1 = (s5[:, None] * w1) * s1[None, :]
    fb1 = (t5 @ w1 + b1) * s1 + t1
    fw2 = w2 * s2[None, :];              fb2 = b2 * s2 + t2
    fw3 = w3 * s3[None, :];              fb3 = b3 * s3 + t3
    fw4 = w4 * s4[None, :];              fb4 = b4 * s4 + t4    # -> z (after bn4)
    # decoder: lrelu((prev * s_in + t_in) @ W + b); bn5 applied at the very output
    fw5 = s4[:, None] * w5;              fb5 = t4 @ w5 + b5
    fw6 = s3[:, None] * w6;              fb6 = t3 @ w6 + b6
    fw7 = s2[:, None] * w7;              fb7 = t2 @ w7 + b7
    fw8 = (s1[:, None] * w8) * s5[None, :]
    fb8 = (t1 @ w8 + b8) * s5 + t5

    params = []
    for w, b in [(fw1, fb1), (fw2, fb2), (fw3, fb3), (fw4, fb4),
                 (fw5, fb5), (fw6, fb6), (fw7, fb7), (fw8, fb8)]:
        fi, fo = w.shape
        wp = jnp.zeros((_rup(fi), _rup(fo)), jnp.float32).at[:fi, :fo].set(w)
        bp = jnp.zeros((1, _rup(fo)), jnp.float32).at[0, :fo].set(b)
        params.append(wp.astype(jnp.bfloat16))
        params.append(bp.astype(compute_dtype))
    return params


# ----------------------------------------------------------------------------- config
def _device_config():
    kind = jax.devices()[0].device_kind.lower()
    if "v7" in kind:
        # 64 MiB VMEM per TC, 2 TCs -> split batch across cores, moderate tile.
        return dict(block_b=2048, vmem_limit=48 * 1024 * 1024,
                    compute_dtype=jnp.bfloat16, core_split=True)
    if "v6" in kind:
        # bf16 VALU, 128 MiB VMEM -> large batch tile.
        return dict(block_b=4096, vmem_limit=64 * 1024 * 1024,
                    compute_dtype=jnp.bfloat16, core_split=False)
    # v5e / older / unknown: no bf16 VPU -> f32 elementwise; modest tile, default VMEM.
    return dict(block_b=1024, vmem_limit=None,
                compute_dtype=jnp.float32, core_split=False)


def _dimension_semantics(grid_len, core_split):
    if core_split and grid_len % 2 == 0:
        cp = getattr(pltpu, "CORE_PARALLEL", None)
        if cp is not None:
            return (cp,)
    return ("parallel",)


# ----------------------------------------------------------------------------- wrapper
def ae_dropout_bn_forward(x, linears, bns, z_dim):
    """x: (B, H, W) float32.  Returns (out, z) with out reshaped back to x.shape."""
    in_shape = x.shape
    B = in_shape[0]
    n_features = in_shape[-1] * in_shape[-2]
    nf_pad = _rup(n_features)
    z_pad = _rup(z_dim)

    cfg = _device_config()
    compute_dtype = cfg["compute_dtype"]
    params = prepare_kernel_params(linears, bns, compute_dtype)

    # Balanced batch tiling: number of steps first, then even-sized tiles (x8 sublanes),
    # so Bp never pads by nearly a whole tile.
    n_steps = max(1, -(-B // cfg["block_b"]))           # cdiv
    if cfg["core_split"] and n_steps > 1 and n_steps % 2 == 1:
        n_steps += 1                                     # even grid for dual-TC split
    TB = _rup(-(-B // n_steps), 8)
    Bp = ((B + TB - 1) // TB) * TB
    grid = (Bp // TB,)

    # bf16 input stream (the first matmul consumes bf16 anyway); padded lane-dense.
    xf = x.reshape(B, -1).astype(jnp.float32)
    xpad = jnp.pad(xf, ((0, Bp - B), (0, nf_pad - n_features))).astype(jnp.bfloat16)

    x_spec = pl.BlockSpec((TB, nf_pad), lambda i: (i, 0))
    param_specs = [pl.BlockSpec(p.shape, lambda i: (0, 0)) for p in params]
    out_specs = (
        pl.BlockSpec((TB, nf_pad), lambda i: (i, 0)),
        pl.BlockSpec((TB, z_pad), lambda i: (i, 0)),
    )

    kernel = functools.partial(ae_dbn_kernel, compute_dtype=compute_dtype)

    out_p, z_p = pl.pallas_call(
        kernel,
        grid=grid,
        in_specs=[x_spec] + param_specs,
        out_specs=out_specs,
        out_shape=(
            jax.ShapeDtypeStruct((Bp, nf_pad), jnp.bfloat16),   # bf16 writeback
            jax.ShapeDtypeStruct((Bp, z_pad), jnp.bfloat16),
        ),
        compiler_params=pltpu.CompilerParams(
            dimension_semantics=_dimension_semantics(grid[0], cfg["core_split"]),
            vmem_limit_bytes=cfg["vmem_limit"]),
    )(xpad, *params)

    out = out_p[:B, :n_features].astype(jnp.float32).reshape(in_shape)
    z = z_p[:B, :z_dim].astype(jnp.float32)
    return out, z


# ----------------------------------------------------------------------------- reference
def ae_dbn_reference(x, linears, bns):
    """Pure-JAX f32 reference of the same eval-mode forward, mirroring the PyTorch
    enc_nn/dec_nn layer order (no folding), for verification."""
    def lrelu(a):
        return jnp.where(a >= 0, a, NEG_SLOPE * a)

    (s1, t1), (s2, t2), (s3, t3), (s4, t4), (s5, t5) = [_bn_affine(*bn) for bn in bns]
    (w1, b1), (w2, b2), (w3, b3), (w4, b4), \
        (w5, b5), (w6, b6), (w7, b7), (w8, b8) = linears

    B = x.shape[0]
    h = x.reshape(B, -1).astype(jnp.float32)
    h = h * s5 + t5
    h = lrelu((h @ w1 + b1) * s1 + t1)
    h = lrelu((h @ w2 + b2) * s2 + t2)
    h = lrelu((h @ w3 + b3) * s3 + t3)
    z = (h @ w4 + b4) * s4 + t4

    d = z * s4 + t4
    d = lrelu(d @ w5 + b5) * s3 + t3
    d = lrelu(d @ w6 + b6) * s2 + t2
    d = lrelu(d @ w7 + b7) * s1 + t1
    out = (d @ w8 + b8) * s5 + t5
    return out.reshape(x.shape), z


# ----------------------------------------------------------------------------- main
if __name__ == "__main__":
    B, H, W = 2, 16, 16
    z_dim = 8
    n_features = H * W

    key = jax.random.PRNGKey(0)
    key_x, key_p = jax.random.split(key)
    x = jax.random.normal(key_x, (B, H, W), jnp.float32)
    linears, bns = init_params(key_p, n_features, z_dim)

    out, z = ae_dropout_bn_forward(x, linears, bns, z_dim)
    out = jax.block_until_ready(out)
    z = jax.block_until_ready(z)

    out_ref, z_ref = ae_dbn_reference(x, linears, bns)
    assert out.shape == (B, H, W) and z.shape == (B, z_dim)
    # bf16 weights/activations/IO vs full-f32 reference -> a few % worst case.
    assert jnp.allclose(out, out_ref, atol=5e-2, rtol=5e-2), (
        "out mismatch, max abs diff = %g" % float(jnp.max(jnp.abs(out - out_ref))))
    assert jnp.allclose(z, z_ref, atol=5e-2, rtol=5e-2), (
        "z mismatch, max abs diff = %g" % float(jnp.max(jnp.abs(z - z_ref))))

    print("KERNEL_OK")
</pallas_src>

<mosaic_0001>
module attributes {stable_mosaic.version = 11 : i64} {
  func.func @ae_dbn_kernel(%arg0: i32, %arg1: memref<8x256xbf16, #tpu.memory_space<vmem>>, %arg2: memref<256x256xbf16, #tpu.memory_space<vmem>>, %arg3: memref<1x256xf32, #tpu.memory_space<vmem>>, %arg4: memref<256x128xbf16, #tpu.memory_space<vmem>>, %arg5: memref<1x128xf32, #tpu.memory_space<vmem>>, %arg6: memref<128x128xbf16, #tpu.memory_space<vmem>>, %arg7: memref<1x128xf32, #tpu.memory_space<vmem>>, %arg8: memref<128x128xbf16, #tpu.memory_space<vmem>>, %arg9: memref<1x128xf32, #tpu.memory_space<vmem>>, %arg10: memref<128x128xbf16, #tpu.memory_space<vmem>>, %arg11: memref<1x128xf32, #tpu.memory_space<vmem>>, %arg12: memref<128x128xbf16, #tpu.memory_space<vmem>>, %arg13: memref<1x128xf32, #tpu.memory_space<vmem>>, %arg14: memref<128x256xbf16, #tpu.memory_space<vmem>>, %arg15: memref<1x256xf32, #tpu.memory_space<vmem>>, %arg16: memref<256x256xbf16, #tpu.memory_space<vmem>>, %arg17: memref<1x256xf32, #tpu.memory_space<vmem>>, %arg18: memref<8x256xbf16, #tpu.memory_space<vmem>>, %arg19: memref<8x128xbf16, #tpu.memory_space<vmem>>) attributes {dimension_semantics = [#tpu.dimension_semantics<parallel>], iteration_bounds = array<i64: 1>, scalar_prefetch = 0 : i64, scratch_operands = 0 : i64, tpu.core_type = #tpu.core_type<tc>, window_params = [{transform_indices = @transform_0, window_bounds = array<i64: 8, 256>}, {pipeline_mode = #tpu.pipeline_mode<synchronous>, transform_indices = @transform_1, window_bounds = array<i64: 256, 256>}, {pipeline_mode = #tpu.pipeline_mode<synchronous>, transform_indices = @transform_2, window_bounds = array<i64: 1, 256>}, {pipeline_mode = #tpu.pipeline_mode<synchronous>, transform_indices = @transform_3, window_bounds = array<i64: 256, 128>}, {pipeline_mode = #tpu.pipeline_mode<synchronous>, transform_indices = @transform_4, window_bounds = array<i64: 1, 128>}, {pipeline_mode = #tpu.pipeline_mode<synchronous>, transform_indices = @transform_5, window_bounds = array<i64: 128, 128>}, {pipeline_mode = #tpu.pipeline_mode<synchronous>, transform_indices = @transform_6, window_bounds = array<i64: 1, 128>}, {pipeline_mode = #tpu.pipeline_mode<synchronous>, transform_indices = @transform_7, window_bounds = array<i64: 128, 128>}, {pipeline_mode = #tpu.pipeline_mode<synchronous>, transform_indices = @transform_8, window_bounds = array<i64: 1, 128>}, {pipeline_mode = #tpu.pipeline_mode<synchronous>, transform_indices = @transform_9, window_bounds = array<i64: 128, 128>}, {pipeline_mode = #tpu.pipeline_mode<synchronous>, transform_indices = @transform_10, window_bounds = array<i64: 1, 128>}, {pipeline_mode = #tpu.pipeline_mode<synchronous>, transform_indices = @transform_11, window_bounds = array<i64: 128, 128>}, {pipeline_mode = #tpu.pipeline_mode<synchronous>, transform_indices = @transform_12, window_bounds = array<i64: 1, 128>}, {pipeline_mode = #tpu.pipeline_mode<synchronous>, transform_indices = @transform_13, window_bounds = array<i64: 128, 256>}, {pipeline_mode = #tpu.pipeline_mode<synchronous>, transform_indices = @transform_14, window_bounds = array<i64: 1, 256>}, {pipeline_mode = #tpu.pipeline_mode<synchronous>, transform_indices = @transform_15, window_bounds = array<i64: 256, 256>}, {pipeline_mode = #tpu.pipeline_mode<synchronous>, transform_indices = @transform_16, window_bounds = array<i64: 1, 256>}, {transform_indices = @transform_17, window_bounds = array<i64: 8, 256>}, {transform_indices = @transform_18, window_bounds = array<i64: 8, 128>}]} {
    %c0 = arith.constant 0 : index
    %c0_0 = arith.constant 0 : index
    %0 = vector.load %arg1[%c0, %c0_0] : memref<8x256xbf16, #tpu.memory_space<vmem>>, vector<8x256xbf16>
    %c0_1 = arith.constant 0 : index
    %c0_2 = arith.constant 0 : index
    %1 = vector.load %arg2[%c0_1, %c0_2] : memref<256x256xbf16, #tpu.memory_space<vmem>>, vector<256x256xbf16>
    %cst = arith.constant dense<0.000000e+00> : vector<8x256xf32>
    %2 = tpu.matmul %0, %1, %cst {dimension_numbers = #tpu.dot_dimension_numbers<[1], [0], [0], [1], [0, 0, 1, 1], [], []>} : vector<8x256xbf16>, vector<256x256xbf16>, vector<8x256xf32> -> vector<8x256xf32>
    %c0_3 = arith.constant 0 : index
    %c0_4 = arith.constant 0 : index
    %3 = vector.load %arg3[%c0_3, %c0_4] : memref<1x256xf32, #tpu.memory_space<vmem>>, vector<1x256xf32>
    %4 = vector.broadcast %3 : vector<1x256xf32> to vector<8x256xf32>
    %5 = arith.addf %2, %4 : vector<8x256xf32>
    %cst_5 = arith.constant 0.00999999977 : f32
    %6 = vector.broadcast %cst_5 : f32 to vector<8x256xf32>
    %7 = arith.mulf %6, %5 : vector<8x256xf32>
    %8 = arith.maximumf %5, %7 : vector<8x256xf32>
    %9 = arith.truncf %8 : vector<8x256xf32> to vector<8x256xbf16>
    %c0_6 = arith.constant 0 : index
    %c0_7 = arith.constant 0 : index
    %10 = vector.load %arg4[%c0_6, %c0_7] : memref<256x128xbf16, #tpu.memory_space<vmem>>, vector<256x128xbf16>
    %cst_8 = arith.constant dense<0.000000e+00> : vector<8x128xf32>
    %11 = tpu.matmul %9, %10, %cst_8 {dimension_numbers = #tpu.dot_dimension_numbers<[1], [0], [0], [1], [0, 0, 1, 1], [], []>} : vector<8x256xbf16>, vector<256x128xbf16>, vector<8x128xf32> -> vector<8x128xf32>
    %c0_9 = arith.constant 0 : index
    %c0_10 = arith.constant 0 : index
    %12 = vector.load %arg5[%c0_9, %c0_10] : memref<1x128xf32, #tpu.memory_space<vmem>>, vector<1x128xf32>
    %13 = vector.broadcast %12 : vector<1x128xf32> to vector<8x128xf32>
    %14 = arith.addf %11, %13 : vector<8x128xf32>
    %cst_11 = arith.constant 0.00999999977 : f32
    %15 = vector.broadcast %cst_11 : f32 to vector<8x128xf32>
    %16 = arith.mulf %15, %14 : vector<8x128xf32>
    %17 = arith.maximumf %14, %16 : vector<8x128xf32>
    %18 = arith.truncf %17 : vector<8x128xf32> to vector<8x128xbf16>
    %c0_12 = arith.constant 0 : index
    %c0_13 = arith.constant 0 : index
    %19 = vector.load %arg6[%c0_12, %c0_13] : memref<128x128xbf16, #tpu.memory_space<vmem>>, vector<128x128xbf16>
    %cst_14 = arith.constant dense<0.000000e+00> : vector<8x128xf32>
    %20 = tpu.matmul %18, %19, %cst_14 {dimension_numbers = #tpu.dot_dimension_numbers<[1], [0], [0], [1], [0, 0, 1, 1], [], []>} : vector<8x128xbf16>, vector<128x128xbf16>, vector<8x128xf32> -> vector<8x128xf32>
    %c0_15 = arith.constant 0 : index
    %c0_16 = arith.constant 0 : index
    %21 = vector.load %arg7[%c0_15, %c0_16] : memref<1x128xf32, #tpu.memory_space<vmem>>, vector<1x128xf32>
    %22 = vector.broadcast %21 : vector<1x128xf32> to vector<8x128xf32>
    %23 = arith.addf %20, %22 : vector<8x128xf32>
    %cst_17 = arith.constant 0.00999999977 : f32
    %24 = vector.broadcast %cst_17 : f32 to vector<8x128xf32>
    %25 = arith.mulf %24, %23 : vector<8x128xf32>
    %26 = arith.maximumf %23, %25 : vector<8x128xf32>
    %27 = arith.truncf %26 : vector<8x128xf32> to vector<8x128xbf16>
    %c0_18 = arith.constant 0 : index
    %c0_19 = arith.constant 0 : index
    %28 = vector.load %arg8[%c0_18, %c0_19] : memref<128x128xbf16, #tpu.memory_space<vmem>>, vector<128x128xbf16>
    %cst_20 = arith.constant dense<0.000000e+00> : vector<8x128xf32>
    %29 = tpu.matmul %27, %28, %cst_20 {dimension_numbers = #tpu.dot_dimension_numbers<[1], [0], [0], [1], [0, 0, 1, 1], [], []>} : vector<8x128xbf16>, vector<128x128xbf16>, vector<8x128xf32> -> vector<8x128xf32>
    %c0_21 = arith.constant 0 : index
    %c0_22 = arith.constant 0 : index
    %30 = vector.load %arg9[%c0_21, %c0_22] : memref<1x128xf32, #tpu.memory_space<vmem>>, vector<1x128xf32>
    %31 = vector.broadcast %30 : vector<1x128xf32> to vector<8x128xf32>
    %32 = arith.addf %29, %31 : vector<8x128xf32>
    %33 = arith.truncf %32 : vector<8x128xf32> to vector<8x128xbf16>
    %c0_23 = arith.constant 0 : index
    %c0_24 = arith.constant 0 : index
    %34 = vector.load %arg10[%c0_23, %c0_24] : memref<128x128xbf16, #tpu.memory_space<vmem>>, vector<128x128xbf16>
    %cst_25 = arith.constant dense<0.000000e+00> : vector<8x128xf32>
    %35 = tpu.matmul %33, %34, %cst_25 {dimension_numbers = #tpu.dot_dimension_numbers<[1], [0], [0], [1], [0, 0, 1, 1], [], []>} : vector<8x128xbf16>, vector<128x128xbf16>, vector<8x128xf32> -> vector<8x128xf32>
    %c0_26 = arith.constant 0 : index
    %c0_27 = arith.constant 0 : index
    %36 = vector.load %arg11[%c0_26, %c0_27] : memref<1x128xf32, #tpu.memory_space<vmem>>, vector<1x128xf32>
    %37 = vector.broadcast %36 : vector<1x128xf32> to vector<8x128xf32>
    %38 = arith.addf %35, %37 : vector<8x128xf32>
    %cst_28 = arith.constant 0.00999999977 : f32
    %39 = vector.broadcast %cst_28 : f32 to vector<8x128xf32>
    %40 = arith.mulf %39, %38 : vector<8x128xf32>
    %41 = arith.maximumf %38, %40 : vector<8x128xf32>
    %42 = arith.truncf %41 : vector<8x128xf32> to vector<8x128xbf16>
    %c0_29 = arith.constant 0 : index
    %c0_30 = arith.constant 0 : index
    %43 = vector.load %arg12[%c0_29, %c0_30] : memref<128x128xbf16, #tpu.memory_space<vmem>>, vector<128x128xbf16>
    %cst_31 = arith.constant dense<0.000000e+00> : vector<8x128xf32>
    %44 = tpu.matmul %42, %43, %cst_31 {dimension_numbers = #tpu.dot_dimension_numbers<[1], [0], [0], [1], [0, 0, 1, 1], [], []>} : vector<8x128xbf16>, vector<128x128xbf16>, vector<8x128xf32> -> vector<8x128xf32>
    %c0_32 = arith.constant 0 : index
    %c0_33 = arith.constant 0 : index
    %45 = vector.load %arg13[%c0_32, %c0_33] : memref<1x128xf32, #tpu.memory_space<vmem>>, vector<1x128xf32>
    %46 = vector.broadcast %45 : vector<1x128xf32> to vector<8x128xf32>
    %47 = arith.addf %44, %46 : vector<8x128xf32>
    %cst_34 = arith.constant 0.00999999977 : f32
    %48 = vector.broadcast %cst_34 : f32 to vector<8x128xf32>
    %49 = arith.mulf %48, %47 : vector<8x128xf32>
    %50 = arith.maximumf %47, %49 : vector<8x128xf32>
    %51 = arith.truncf %50 : vector<8x128xf32> to vector<8x128xbf16>
    %c0_35 = arith.constant 0 : index
    %c0_36 = arith.constant 0 : index
    %52 = vector.load %arg14[%c0_35, %c0_36] : memref<128x256xbf16, #tpu.memory_space<vmem>>, vector<128x256xbf16>
    %cst_37 = arith.constant dense<0.000000e+00> : vector<8x256xf32>
    %53 = tpu.matmul %51, %52, %cst_37 {dimension_numbers = #tpu.dot_dimension_numbers<[1], [0], [0], [1], [0, 0, 1, 1], [], []>} : vector<8x128xbf16>, vector<128x256xbf16>, vector<8x256xf32> -> vector<8x256xf32>
    %c0_38 = arith.constant 0 : index
    %c0_39 = arith.constant 0 : index
    %54 = vector.load %arg15[%c0_38, %c0_39] : memref<1x256xf32, #tpu.memory_space<vmem>>, vector<1x256xf32>
    %55 = vector.broadcast %54 : vector<1x256xf32> to vector<8x256xf32>
    %56 = arith.addf %53, %55 : vector<8x256xf32>
    %cst_40 = arith.constant 0.00999999977 : f32
    %57 = vector.broadcast %cst_40 : f32 to vector<8x256xf32>
    %58 = arith.mulf %57, %56 : vector<8x256xf32>
    %59 = arith.maximumf %56, %58 : vector<8x256xf32>
    %60 = arith.truncf %59 : vector<8x256xf32> to vector<8x256xbf16>
    %c0_41 = arith.constant 0 : index
    %c0_42 = arith.constant 0 : index
    %61 = vector.load %arg16[%c0_41, %c0_42] : memref<256x256xbf16, #tpu.memory_space<vmem>>, vector<256x256xbf16>
    %cst_43 = arith.constant dense<0.000000e+00> : vector<8x256xf32>
    %62 = tpu.matmul %60, %61, %cst_43 {dimension_numbers = #tpu.dot_dimension_numbers<[1], [0], [0], [1], [0, 0, 1, 1], [], []>} : vector<8x256xbf16>, vector<256x256xbf16>, vector<8x256xf32> -> vector<8x256xf32>
    %c0_44 = arith.constant 0 : index
    %c0_45 = arith.constant 0 : index
    %63 = vector.load %arg17[%c0_44, %c0_45] : memref<1x256xf32, #tpu.memory_space<vmem>>, vector<1x256xf32>
    %64 = vector.broadcast %63 : vector<1x256xf32> to vector<8x256xf32>
    %65 = arith.addf %62, %64 : vector<8x256xf32>
    %66 = arith.truncf %32 : vector<8x128xf32> to vector<8x128xbf16>
    %c0_46 = arith.constant 0 : index
    %c0_47 = arith.constant 0 : index
    %67 = vector.load %arg19[%c0_46, %c0_47] : memref<8x128xbf16, #tpu.memory_space<vmem>>, vector<8x128xbf16>
    tpu.vector_store %arg19[%c0_46, %c0_47], %66 {strides = array<i32>} : memref<8x128xbf16, #tpu.memory_space<vmem>>, vector<8x128xbf16>,
    %68 = arith.truncf %65 : vector<8x256xf32> to vector<8x256xbf16>
    %c0_48 = arith.constant 0 : index
    %c0_49 = arith.constant 0 : index
    %69 = vector.load %arg18[%c0_48, %c0_49] : memref<8x256xbf16, #tpu.memory_space<vmem>>, vector<8x256xbf16>
    tpu.vector_store %arg18[%c0_48, %c0_49], %68 {strides = array<i32>} : memref<8x256xbf16, #tpu.memory_space<vmem>>, vector<8x256xbf16>,
    return
  }
  func.func @transform_0(%arg0: i32) -> (i32, i32) {
    %c0_i32 = arith.constant 0 : i32
    %c0_i32_0 = arith.constant 0 : i32
    return %arg0, %c0_i32 : i32, i32
  }
  func.func @transform_1(%arg0: i32) -> (i32, i32) {
    %c0_i32 = arith.constant 0 : i32
    %c0_i32_0 = arith.constant 0 : i32
    %c0_i32_1 = arith.constant 0 : i32
    return %c0_i32, %c0_i32_0 : i32, i32
  }
  func.func @transform_2(%arg0: i32) -> (i32, i32) {
    %c0_i32 = arith.constant 0 : i32
    %c0_i32_0 = arith.constant 0 : i32
    %c0_i32_1 = arith.constant 0 : i32
    return %c0_i32, %c0_i32_0 : i32, i32
  }
  func.func @transform_3(%arg0: i32) -> (i32, i32) {
    %c0_i32 = arith.constant 0 : i32
    %c0_i32_0 = arith.constant 0 : i32
    %c0_i32_1 = arith.constant 0 : i32
    return %c0_i32, %c0_i32_0 : i32, i32
  }
  func.func @transform_4(%arg0: i32) -> (i32, i32) {
    %c0_i32 = arith.constant 0 : i32
    %c0_i32_0 = arith.constant 0 : i32
    %c0_i32_1 = arith.constant 0 : i32
    return %c0_i32, %c0_i32_0 : i32, i32
  }
  func.func @transform_5(%arg0: i32) -> (i32, i32) {
    %c0_i32 = arith.constant 0 : i32
    %c0_i32_0 = arith.constant 0 : i32
    %c0_i32_1 = arith.constant 0 : i32
    return %c0_i32, %c0_i32_0 : i32, i32
  }
  func.func @transform_6(%arg0: i32) -> (i32, i32) {
    %c0_i32 = arith.constant 0 : i32
    %c0_i32_0 = arith.constant 0 : i32
    %c0_i32_1 = arith.constant 0 : i32
    return %c0_i32, %c0_i32_0 : i32, i32
  }
  func.func @transform_7(%arg0: i32) -> (i32, i32) {
    %c0_i32 = arith.constant 0 : i32
    %c0_i32_0 = arith.constant 0 : i32
    %c0_i32_1 = arith.constant 0 : i32
    return %c0_i32, %c0_i32_0 : i32, i32
  }
  func.func @transform_8(%arg0: i32) -> (i32, i32) {
    %c0_i32 = arith.constant 0 : i32
    %c0_i32_0 = arith.constant 0 : i32
    %c0_i32_1 = arith.constant 0 : i32
    return %c0_i32, %c0_i32_0 : i32, i32
  }
  func.func @transform_9(%arg0: i32) -> (i32, i32) {
    %c0_i32 = arith.constant 0 : i32
    %c0_i32_0 = arith.constant 0 : i32
    %c0_i32_1 = arith.constant 0 : i32
    return %c0_i32, %c0_i32_0 : i32, i32
  }
  func.func @transform_10(%arg0: i32) -> (i32, i32) {
    %c0_i32 = arith.constant 0 : i32
    %c0_i32_0 = arith.constant 0 : i32
    %c0_i32_1 = arith.constant 0 : i32
    return %c0_i32, %c0_i32_0 : i32, i32
  }
  func.func @transform_11(%arg0: i32) -> (i32, i32) {
    %c0_i32 = arith.constant 0 : i32
    %c0_i32_0 = arith.constant 0 : i32
    %c0_i32_1 = arith.constant 0 : i32
    return %c0_i32, %c0_i32_0 : i32, i32
  }
  func.func @transform_12(%arg0: i32) -> (i32, i32) {
    %c0_i32 = arith.constant 0 : i32
    %c0_i32_0 = arith.constant 0 : i32
    %c0_i32_1 = arith.constant 0 : i32
    return %c0_i32, %c0_i32_0 : i32, i32
  }
  func.func @transform_13(%arg0: i32) -> (i32, i32) {
    %c0_i32 = arith.constant 0 : i32
    %c0_i32_0 = arith.constant 0 : i32
    %c0_i32_1 = arith.constant 0 : i32
    return %c0_i32, %c0_i32_0 : i32, i32
  }
  func.func @transform_14(%arg0: i32) -> (i32, i32) {
    %c0_i32 = arith.constant 0 : i32
    %c0_i32_0 = arith.constant 0 : i32
    %c0_i32_1 = arith.constant 0 : i32
    return %c0_i32, %c0_i32_0 : i32, i32
  }
  func.func @transform_15(%arg0: i32) -> (i32, i32) {
    %c0_i32 = arith.constant 0 : i32
    %c0_i32_0 = arith.constant 0 : i32
    %c0_i32_1 = arith.constant 0 : i32
    return %c0_i32, %c0_i32_0 : i32, i32
  }
  func.func @transform_16(%arg0: i32) -> (i32, i32) {
    %c0_i32 = arith.constant 0 : i32
    %c0_i32_0 = arith.constant 0 : i32
    %c0_i32_1 = arith.constant 0 : i32
    return %c0_i32, %c0_i32_0 : i32, i32
  }
  func.func @transform_17(%arg0: i32) -> (i32, i32) {
    %c0_i32 = arith.constant 0 : i32
    %c0_i32_0 = arith.constant 0 : i32
    return %arg0, %c0_i32 : i32, i32
  }
  func.func @transform_18(%arg0: i32) -> (i32, i32) {
    %c0_i32 = arith.constant 0 : i32
    %c0_i32_0 = arith.constant 0 : i32
    return %arg0, %c0_i32 : i32, i32
  }
}

</mosaic_0001>

<llo_original>
// kernel: tpu_custom_call.1
$region0: #{tpu_custom_call.1}
  #allocation0 [shape = 'u32[]', space=smem, size = 0x4, offset = 0x4, fixed_abs, tag = 'smem constant byte address 0x4 - core index']
  #allocation1 [shape = 'u32[144,128]{1,0:T(1,128)}', space=vmem, size = 0x12000, scoped, tag = 'internal scratch']
  %s0 = inlined_call_operand.hbm [shape: bf16[8,256], index: 0, kind: input, shape index: {}]
  %s1 = inlined_call_operand.hbm [shape: bf16[256,256], index: 1, kind: input, shape index: {}]
  %s2 = inlined_call_operand.vmem [shape: f32[1,256], index: 2, kind: input, shape index: {}]
  %s3 = inlined_call_operand.hbm [shape: bf16[256,128], index: 3, kind: input, shape index: {}]
  %s4 = inlined_call_operand.vmem [shape: f32[1,128], index: 4, kind: input, shape index: {}]
  %s5 = inlined_call_operand.hbm [shape: bf16[128,128], index: 5, kind: input, shape index: {}]
  %s6 = inlined_call_operand.vmem [shape: f32[1,128], index: 6, kind: input, shape index: {}]
  %s7 = inlined_call_operand.hbm [shape: bf16[128,128], index: 7, kind: input, shape index: {}]
  %s8 = inlined_call_operand.vmem [shape: f32[1,128], index: 8, kind: input, shape index: {}]
  %s9 = inlined_call_operand.hbm [shape: bf16[128,128], index: 9, kind: input, shape index: {}]
  %s10 = inlined_call_operand.vmem [shape: f32[1,128], index: 10, kind: input, shape index: {}]
  %s11 = inlined_call_operand.hbm [shape: bf16[128,128], index: 11, kind: input, shape index: {}]
  %s12 = inlined_call_operand.vmem [shape: f32[1,128], index: 12, kind: input, shape index: {}]
  %s13 = inlined_call_operand.hbm [shape: bf16[128,256], index: 13, kind: input, shape index: {}]
  %s14 = inlined_call_operand.vmem [shape: f32[1,256], index: 14, kind: input, shape index: {}]
  %s15 = inlined_call_operand.hbm [shape: bf16[256,256], index: 15, kind: input, shape index: {}]
  %s16 = inlined_call_operand.vmem [shape: f32[1,256], index: 16, kind: input, shape index: {}]
  %s17 = inlined_call_operand.hbm [shape: bf16[8,256], index: 17, kind: output, shape index: {0}]
  %s18 = inlined_call_operand.hbm [shape: bf16[8,128], index: 18, kind: output, shape index: {1}]
  %19 = xla_tuple %s17, %s18
  %s20 = sld [smem:[#allocation0]]
  $region122: #{tpu_custom_call.1} parent=0
    _
  %s22 = ssub.s32 1, %s20
  %s23 = scalar_select 0, %s22, %s20
  $region1: #{tpu_custom_call.1} parent=0
    #allocation2 [shape = 'u8[4096]{0}', space=vmem, size = 0x1000, scoped, tag = 'input window, operand 0, single buffered']
    #allocation3 [shape = 's32[1]{0}', space=sflag, size = 0x4, scoped, tag = 'scoped memory for tpu_custom_call.1']
    #allocation4 [shape = 's32[1]{0}', space=sflag, size = 0x4, scoped, tag = 'scoped memory for tpu_custom_call.1']
    #allocation5 [shape = 'u8[131072]{0}', space=vmem, size = 0x20000, scoped, tag = 'input window, operand 1, single buffered']
    #allocation6 [shape = 's32[1]{0}', space=sflag, size = 0x4, scoped, tag = 'scoped memory for tpu_custom_call.1']
    #allocation7 [shape = 'u8[65536]{0}', space=vmem, size = 0x10000, scoped, tag = 'input window, operand 3, single buffered']
    #allocation8 [shape = 'u8[32768]{0}', space=vmem, size = 0x8000, scoped, tag = 'input window, operand 5, single buffered']
    #allocation9 [shape = 's32[1]{0}', space=sflag, size = 0x4, scoped, tag = 'scoped memory for tpu_custom_call.1']
    #allocation10 [shape = 'u8[32768]{0}', space=vmem, size = 0x8000, scoped, tag = 'input window, operand 7, single buffered']
    #allocation11 [shape = 'u8[32768]{0}', space=vmem, size = 0x8000, scoped, tag = 'input window, operand 9, single buffered']
    #allocation12 [shape = 's32[1]{0}', space=sflag, size = 0x4, scoped, tag = 'scoped memory for tpu_custom_call.1']
    #allocation13 [shape = 'u8[32768]{0}', space=vmem, size = 0x8000, scoped, tag = 'input window, operand 11, single buffered']
    #allocation14 [shape = 'u8[65536]{0}', space=vmem, size = 0x10000, scoped, tag = 'input window, operand 13, single buffered']
    #allocation15 [shape = 's32[1]{0}', space=sflag, size = 0x4, scoped, tag = 'scoped memory for tpu_custom_call.1']
    #allocation16 [shape = 'u8[131072]{0}', space=vmem, size = 0x20000, scoped, tag = 'input window, operand 15, single buffered']
    #allocation17 [shape = 'u8[4096]{0}', space=vmem, size = 0x1000, scoped, tag = 'output window, operand 0, single buffered']
    #allocation18 [shape = 'u8[2048]{0}', space=vmem, size = 0x800, scoped, tag = 'output window, operand 1, single buffered']
    #allocation19 [shape = 's32[1]{0}', space=sflag, size = 0x4, scoped, tag = 'scoped memory for tpu_custom_call.1']
    %24 = vsyncpa [#allocation3], 0
    %25 = vsyncpa [#allocation6], 0
    %26 = vsyncpa [#allocation9], 0
    %27 = vsyncpa [#allocation12], 0
    %28 = vsyncpa [#allocation15], 0
    %29 = vsyncpa [#allocation4], 0
    %30 = vsyncpa [#allocation19], 0
    // Predicated region
    $region2: #{tpu_custom_call.1} parent=1 // pred_check
      _
    $region3: #{tpu_custom_call.1} parent=1 // pred_check_branch
      %32 = sbr.rel (0) target = $region5
    $region4: #{tpu_custom_call.1} parent=1 // pred_region
      %s34 = ssub.s32 128, 128
      %35 = vsyncadd [#allocation3], %s34
      %s37 = sshll.u32 [#allocation2], 4
      %s38 = int_to_ptr.vmem [resolvable:$true] %s37
      %40 = dma.hbm_to_vmem [thread:$0]  %s0, 128, %s38, [#allocation3]
    $region5: #{tpu_custom_call.1} parent=1 // pred_fallthru
      _
    // Predicated region
    $region6: #{tpu_custom_call.1} parent=1 // pred_check
      _
    $region7: #{tpu_custom_call.1} parent=1 // pred_check_branch
      %42 = sbr.rel (0) target = $region9
    $region8: #{tpu_custom_call.1} parent=1 // pred_region
      %s44 = ssub.s32 4096, 4096
      %45 = vsyncadd [#allocation6], %s44
      %s46 = sshll.u32 [#allocation5], 4
      %s47 = int_to_ptr.vmem [resolvable:$true] %s46
      %52 = dma.hbm_to_vmem [thread:$0]  %s1, 4096, %s47, [#allocation6], 128, 128, 8
    $region9: #{tpu_custom_call.1} parent=1 // pred_fallthru
      _
    // Predicated region
    $region10: #{tpu_custom_call.1} parent=1 // pred_check
      _
    $region11: #{tpu_custom_call.1} parent=1 // pred_check_branch
      %54 = sbr.rel (0) target = $region13
    $region12: #{tpu_custom_call.1} parent=1 // pred_region
      _
    $region13: #{tpu_custom_call.1} parent=1 // pred_fallthru
      _
    // Predicated region
    $region14: #{tpu_custom_call.1} parent=1 // pred_check
      _
    $region15: #{tpu_custom_call.1} parent=1 // pred_check_branch
      %56 = sbr.rel (0) target = $region17
    $region16: #{tpu_custom_call.1} parent=1 // pred_region
      %s58 = ssub.s32 2048, 2048
      %59 = vsyncadd [#allocation6], %s58
      %s60 = sshll.u32 [#allocation7], 4
      %s61 = int_to_ptr.vmem [resolvable:$true] %s60
      %66 = dma.hbm_to_vmem [thread:$0]  %s3, 2048, %s61, [#allocation6], 64, 64, 4
    $region17: #{tpu_custom_call.1} parent=1 // pred_fallthru
      _
    // Predicated region
    $region18: #{tpu_custom_call.1} parent=1 // pred_check
      _
    $region19: #{tpu_custom_call.1} parent=1 // pred_check_branch
      %68 = sbr.rel (0) target = $region21
    $region20: #{tpu_custom_call.1} parent=1 // pred_region
      _
    $region21: #{tpu_custom_call.1} parent=1 // pred_fallthru
      _
    // Predicated region
    $region22: #{tpu_custom_call.1} parent=1 // pred_check
      _
    $region23: #{tpu_custom_call.1} parent=1 // pred_check_branch
      %70 = sbr.rel (0) target = $region25
    $region24: #{tpu_custom_call.1} parent=1 // pred_region
      %s72 = ssub.s32 1024, 1024
      %73 = vsyncadd [#allocation9], %s72
      %s74 = sshll.u32 [#allocation8], 4
      %s75 = int_to_ptr.vmem [resolvable:$true] %s74
      %80 = dma.hbm_to_vmem [thread:$0]  %s5, 1024, %s75, [#allocation9], 64, 64, 4
    $region25: #{tpu_custom_call.1} parent=1 // pred_fallthru
      _
    // Predicated region
    $region26: #{tpu_custom_call.1} parent=1 // pred_check
      _
    $region27: #{tpu_custom_call.1} parent=1 // pred_check_branch
      %82 = sbr.rel (0) target = $region29
    $region28: #{tpu_custom_call.1} parent=1 // pred_region
      _
    $region29: #{tpu_custom_call.1} parent=1 // pred_fallthru
      _
    // Predicated region
    $region30: #{tpu_custom_call.1} parent=1 // pred_check
      _
    $region31: #{tpu_custom_call.1} parent=1 // pred_check_branch
      %84 = sbr.rel (0) target = $region33
    $region32: #{tpu_custom_call.1} parent=1 // pred_region
      %s86 = ssub.s32 1024, 1024
      %87 = vsyncadd [#allocation9], %s86
      %s88 = sshll.u32 [#allocation10], 4
      %s89 = int_to_ptr.vmem [resolvable:$true] %s88
      %94 = dma.hbm_to_vmem [thread:$0]  %s7, 1024, %s89, [#allocation9], 64, 64, 4
    $region33: #{tpu_custom_call.1} parent=1 // pred_fallthru
      _
    // Predicated region
    $region34: #{tpu_custom_call.1} parent=1 // pred_check
      _
    $region35: #{tpu_custom_call.1} parent=1 // pred_check_branch
      %96 = sbr.rel (0) target = $region37
    $region36: #{tpu_custom_call.1} parent=1 // pred_region
      _
    $region37: #{tpu_custom_call.1} parent=1 // pred_fallthru
      _
    // Predicated region
    $region38: #{tpu_custom_call.1} parent=1 // pred_check
      _
    $region39: #{tpu_custom_call.1} parent=1 // pred_check_branch
      %98 = sbr.rel (0) target = $region41
    $region40: #{tpu_custom_call.1} parent=1 // pred_region
      %s100 = ssub.s32 1024, 1024
      %101 = vsyncadd [#allocation12], %s100
      %s102 = sshll.u32 [#allocation11], 4
      %s103 = int_to_ptr.vmem [resolvable:$true] %s102
      %108 = dma.hbm_to_vmem [thread:$0]  %s9, 1024, %s103, [#allocation12], 64, 64, 4
    $region41: #{tpu_custom_call.1} parent=1 // pred_fallthru
      _
    // Predicated region
    $region42: #{tpu_custom_call.1} parent=1 // pred_check
      _
    $region43: #{tpu_custom_call.1} parent=1 // pred_check_branch
      %110 = sbr.rel (0) target = $region45
    $region44: #{tpu_custom_call.1} parent=1 // pred_region
      _
    $region45: #{tpu_custom_call.1} parent=1 // pred_fallthru
      _
    // Predicated region
    $region46: #{tpu_custom_call.1} parent=1 // pred_check
      _
    $region47: #{tpu_custom_call.1} parent=1 // pred_check_branch
      %112 = sbr.rel (0) target = $region49
    $region48: #{tpu_custom_call.1} parent=1 // pred_region
      %s114 = ssub.s32 1024, 1024
      %115 = vsyncadd [#allocation12], %s114
      %s116 = sshll.u32 [#allocation13], 4
      %s117 = int_to_ptr.vmem [resolvable:$true] %s116
      %122 = dma.hbm_to_vmem [thread:$0]  %s11, 1024, %s117, [#allocation12], 64, 64, 4
    $region49: #{tpu_custom_call.1} parent=1 // pred_fallthru
      _
    // Predicated region
    $region50: #{tpu_custom_call.1} parent=1 // pred_check
      _
    $region51: #{tpu_custom_call.1} parent=1 // pred_check_branch
      %124 = sbr.rel (0) target = $region53
    $region52: #{tpu_custom_call.1} parent=1 // pred_region
      _
    $region53: #{tpu_custom_call.1} parent=1 // pred_fallthru
      _
    // Predicated region
    $region54: #{tpu_custom_call.1} parent=1 // pred_check
      _
    $region55: #{tpu_custom_call.1} parent=1 // pred_check_branch
      %126 = sbr.rel (0) target = $region57
    $region56: #{tpu_custom_call.1} parent=1 // pred_region
      %s128 = ssub.s32 2048, 2048
      %129 = vsyncadd [#allocation15], %s128
      %s130 = sshll.u32 [#allocation14], 4
      %s131 = int_to_ptr.vmem [resolvable:$true] %s130
      %136 = dma.hbm_to_vmem [thread:$0]  %s13, 2048, %s131, [#allocation15], 128, 128, 8
    $region57: #{tpu_custom_call.1} parent=1 // pred_fallthru
      _
    // Predicated region
    $region58: #{tpu_custom_call.1} parent=1 // pred_check
      _
    $region59: #{tpu_custom_call.1} parent=1 // pred_check_branch
      %138 = sbr.rel (0) target = $region61
    $region60: #{tpu_custom_call.1} parent=1 // pred_region
      _
    $region61: #{tpu_custom_call.1} parent=1 // pred_fallthru
      _
    // Predicated region
    $region62: #{tpu_custom_call.1} parent=1 // pred_check
      _
    $region63: #{tpu_custom_call.1} parent=1 // pred_check_branch
      %140 = sbr.rel (0) target = $region65
    $region64: #{tpu_custom_call.1} parent=1 // pred_region
      %s142 = ssub.s32 4096, 4096
      %143 = vsyncadd [#allocation15], %s142
      %s144 = sshll.u32 [#allocation16], 4
      %s145 = int_to_ptr.vmem [resolvable:$true] %s144
      %150 = dma.hbm_to_vmem [thread:$0]  %s15, 4096, %s145, [#allocation15], 128, 128, 8
    $region65: #{tpu_custom_call.1} parent=1 // pred_fallthru
      _
    // Predicated region
    $region66: #{tpu_custom_call.1} parent=1 // pred_check
      _
    $region67: #{tpu_custom_call.1} parent=1 // pred_check_branch
      %152 = sbr.rel (0) target = $region69
    $region68: #{tpu_custom_call.1} parent=1 // pred_region
      _
    $region69: #{tpu_custom_call.1} parent=1 // pred_fallthru
      _
    // Predicated region
    $region70: #{tpu_custom_call.1} parent=1 // pred_check
      _
    $region71: #{tpu_custom_call.1} parent=1 // pred_check_branch
      %154 = sbr.rel (0) target = $region73
    $region72: #{tpu_custom_call.1} parent=1 // pred_region
      %155 = dma.done [#allocation3], 128
    $region73: #{tpu_custom_call.1} parent=1 // pred_fallthru
      _
    // Predicated region
    $region74: #{tpu_custom_call.1} parent=1 // pred_check
      _
    $region75: #{tpu_custom_call.1} parent=1 // pred_check_branch
      %157 = sbr.rel (0) target = $region77
    $region76: #{tpu_custom_call.1} parent=1 // pred_region
      %158 = dma.done [#allocation6], 4096
    $region77: #{tpu_custom_call.1} parent=1 // pred_fallthru
      _
    // Predicated region
    $region78: #{tpu_custom_call.1} parent=1 // pred_check
      _
    $region79: #{tpu_custom_call.1} parent=1 // pred_check_branch
      %160 = sbr.rel (0) target = $region81
    $region80: #{tpu_custom_call.1} parent=1 // pred_region
      %161 = dma.done [#allocation6], 2048
    $region81: #{tpu_custom_call.1} parent=1 // pred_fallthru
      _
    // Predicated region
    $region82: #{tpu_custom_call.1} parent=1 // pred_check
      _
    $region83: #{tpu_custom_call.1} parent=1 // pred_check_branch
      %163 = sbr.rel (0) target = $region85
    $region84: #{tpu_custom_call.1} parent=1 // pred_region
      %164 = dma.done [#allocation9], 1024
    $region85: #{tpu_custom_call.1} parent=1 // pred_fallthru
      _
    // Predicated region
    $region86: #{tpu_custom_call.1} parent=1 // pred_check
      _
    $region87: #{tpu_custom_call.1} parent=1 // pred_check_branch
      %166 = sbr.rel (0) target = $region89
    $region88: #{tpu_custom_call.1} parent=1 // pred_region
      %167 = dma.done [#allocation9], 1024
    $region89: #{tpu_custom_call.1} parent=1 // pred_fallthru
      _
    // Predicated region
    $region90: #{tpu_custom_call.1} parent=1 // pred_check
      _
    $region91: #{tpu_custom_call.1} parent=1 // pred_check_branch
      %169 = sbr.rel (0) target = $region93
    $region92: #{tpu_custom_call.1} parent=1 // pred_region
      %170 = dma.done [#allocation12], 1024
    $region93: #{tpu_custom_call.1} parent=1 // pred_fallthru
      _
    // Predicated region
    $region94: #{tpu_custom_call.1} parent=1 // pred_check
      _
    $region95: #{tpu_custom_call.1} parent=1 // pred_check_branch
      %172 = sbr.rel (0) target = $region97
    $region96: #{tpu_custom_call.1} parent=1 // pred_region
      %173 = dma.done [#allocation12], 1024
    $region97: #{tpu_custom_call.1} parent=1 // pred_fallthru
      _
    // Predicated region
    $region98: #{tpu_custom_call.1} parent=1 // pred_check
      _
    $region99: #{tpu_custom_call.1} parent=1 // pred_check_branch
      %175 = sbr.rel (0) target = $region101
    $region100: #{tpu_custom_call.1} parent=1 // pred_region
      %176 = dma.done [#allocation15], 2048
    $region101: #{tpu_custom_call.1} parent=1 // pred_fallthru
      _
    // Predicated region
    $region102: #{tpu_custom_call.1} parent=1 // pred_check
      _
    $region103: #{tpu_custom_call.1} parent=1 // pred_check_branch
      %178 = sbr.rel (0) target = $region105
    $region104: #{tpu_custom_call.1} parent=1 // pred_region
      %179 = dma.done [#allocation15], 4096
    $region105: #{tpu_custom_call.1} parent=1 // pred_fallthru
      _
    %v181 = vld [vmem:[#allocation2] sm:$0xff]
    %v182 = vld [vmem:[#allocation5] sm:$0xff]
    %v183 = vld [vmem:[#allocation5 + $0x8] sm:$0xff]
    %v184 = vld [vmem:[#allocation5 + $0x10] sm:$0xff]
    %v185 = vld [vmem:[#allocation5 + $0x18] sm:$0xff]
    %v186 = vld [vmem:[#allocation5 + $0x20] sm:$0xff]
    %v187 = vld [vmem:[#allocation5 + $0x28] sm:$0xff]
    %v188 = vld [vmem:[#allocation5 + $0x30] sm:$0xff]
    %v189 = vld [vmem:[#allocation5 + $0x38] sm:$0xff]
    %v190 = vld [vmem:[#allocation5 + $0x40] sm:$0xff]
    %v191 = vld [vmem:[#allocation5 + $0x48] sm:$0xff]
    %v192 = vld [vmem:[#allocation5 + $0x50] sm:$0xff]
    %v193 = vld [vmem:[#allocation5 + $0x58] sm:$0xff]
    %v194 = vld [vmem:[#allocation5 + $0x60] sm:$0xff]
    %v195 = vld [vmem:[#allocation5 + $0x68] sm:$0xff]
    %v196 = vld [vmem:[#allocation5 + $0x70] sm:$0xff]
    %v197 = vld [vmem:[#allocation5 + $0x78] sm:$0xff]
    %v198 = vld [vmem:[#allocation5 + $0x80] sm:$0xff]
    %v199 = vld [vmem:[#allocation5 + $0x88] sm:$0xff]
    %v200 = vld [vmem:[#allocation5 + $0x90] sm:$0xff]
    %v201 = vld [vmem:[#allocation5 + $0x98] sm:$0xff]
    %v202 = vld [vmem:[#allocation5 + $0xa0] sm:$0xff]
    %v203 = vld [vmem:[#allocation5 + $0xa8] sm:$0xff]
    %v204 = vld [vmem:[#allocation5 + $0xb0] sm:$0xff]
    %v205 = vld [vmem:[#allocation5 + $0xb8] sm:$0xff]
    %v206 = vld [vmem:[#allocation5 + $0xc0] sm:$0xff]
    %v207 = vld [vmem:[#allocation5 + $0xc8] sm:$0xff]
    %v208 = vld [vmem:[#allocation5 + $0xd0] sm:$0xff]
    %v209 = vld [vmem:[#allocation5 + $0xd8] sm:$0xff]
    %v210 = vld [vmem:[#allocation5 + $0xe0] sm:$0xff]
    %v211 = vld [vmem:[#allocation5 + $0xe8] sm:$0xff]
    %v212 = vld [vmem:[#allocation5 + $0xf0] sm:$0xff]
    %v213 = vld [vmem:[#allocation5 + $0xf8] sm:$0xff]
    %v214 = vld [vmem:[%s2] sm:$0x3]
    %v216 = vlaneseq
    %v217 = vshrl.u32 %v216, 7
    %v218 = vsub.s32 0, %v217
    %v219 = vrot.slane %v214, %v218
    %v220 = vlaneseq
    %v221 = vshrl.u32 %v220, 7
    %v222 = vsub.s32 1, %v221
    %v223 = vrot.slane %v214, %v222
    %v227 = vunpack.c.l.b16 %v181
    %v228 = vunpack.c.h.b16 %v181
    %v229 = vpack.c.b16 %v227, %v227
    %v230 = vpack.c.b16 %v228, %v228
    %v265 = vunpack.c.l.b16 %v182
    %v266 = vunpack.c.h.b16 %v182
    %v267 = vunpack.c.l.b16 %v183
    %v268 = vunpack.c.h.b16 %v183
    %v269 = vunpack.c.l.b16 %v184
    %v270 = vunpack.c.h.b16 %v184
    %v271 = vunpack.c.l.b16 %v185
    %v272 = vunpack.c.h.b16 %v185
    %v273 = vunpack.c.l.b16 %v186
    %v274 = vunpack.c.h.b16 %v186
    %v275 = vunpack.c.l.b16 %v187
    %v276 = vunpack.c.h.b16 %v187
    %v277 = vunpack.c.l.b16 %v188
    %v278 = vunpack.c.h.b16 %v188
    %v279 = vunpack.c.l.b16 %v189
    %v280 = vunpack.c.h.b16 %v189
    %v281 = vunpack.c.l.b16 %v190
    %v282 = vunpack.c.h.b16 %v190
    %v283 = vunpack.c.l.b16 %v191
    %v284 = vunpack.c.h.b16 %v191
    %v285 = vunpack.c.l.b16 %v192
    %v286 = vunpack.c.h.b16 %v192
    %v287 = vunpack.c.l.b16 %v193
    %v288 = vunpack.c.h.b16 %v193
    %v289 = vunpack.c.l.b16 %v194
    %v290 = vunpack.c.h.b16 %v194
    %v291 = vunpack.c.l.b16 %v195
    %v292 = vunpack.c.h.b16 %v195
    %v293 = vunpack.c.l.b16 %v196
    %v294 = vunpack.c.h.b16 %v196
    %v295 = vunpack.c.l.b16 %v197
    %v296 = vunpack.c.h.b16 %v197
    %v297 = vunpack.c.l.b16 %v198
    %v298 = vunpack.c.h.b16 %v198
    %v299 = vunpack.c.l.b16 %v199
    %v300 = vunpack.c.h.b16 %v199
    %v301 = vunpack.c.l.b16 %v200
    %v302 = vunpack.c.h.b16 %v200
    %v303 = vunpack.c.l.b16 %v201
    %v304 = vunpack.c.h.b16 %v201
    %v305 = vunpack.c.l.b16 %v202
    %v306 = vunpack.c.h.b16 %v202
    %v307 = vunpack.c.l.b16 %v203
    %v308 = vunpack.c.h.b16 %v203
    %v309 = vunpack.c.l.b16 %v204
    %v310 = vunpack.c.h.b16 %v204
    %v311 = vunpack.c.l.b16 %v205
    %v312 = vunpack.c.h.b16 %v205
    %v313 = vunpack.c.l.b16 %v206
    %v314 = vunpack.c.h.b16 %v206
    %v315 = vunpack.c.l.b16 %v207
    %v316 = vunpack.c.h.b16 %v207
    %v317 = vunpack.c.l.b16 %v208
    %v318 = vunpack.c.h.b16 %v208
    %v319 = vunpack.c.l.b16 %v209
    %v320 = vunpack.c.h.b16 %v209
    %v321 = vunpack.c.l.b16 %v210
    %v322 = vunpack.c.h.b16 %v210
    %v323 = vunpack.c.l.b16 %v211
    %v324 = vunpack.c.h.b16 %v211
    %v325 = vunpack.c.l.b16 %v212
    %v326 = vunpack.c.h.b16 %v212
    %v327 = vunpack.c.l.b16 %v213
    %v328 = vunpack.c.h.b16 %v213
    %v329 = vpack.c.b16 %v267, %v265
    %v330 = vpack.c.b16 %v268, %v266
    %v331 = vpack.c.b16 %v271, %v269
    %v332 = vpack.c.b16 %v272, %v270
    %v333 = vpack.c.b16 %v275, %v273
    %v334 = vpack.c.b16 %v276, %v274
    %v335 = vpack.c.b16 %v279, %v277
    %v336 = vpack.c.b16 %v280, %v278
    %v337 = vpack.c.b16 %v283, %v281
    %v338 = vpack.c.b16 %v284, %v282
    %v339 = vpack.c.b16 %v287, %v285
    %v340 = vpack.c.b16 %v288, %v286
    %v341 = vpack.c.b16 %v291, %v289
    %v342 = vpack.c.b16 %v292, %v290
    %v343 = vpack.c.b16 %v295, %v293
    %v344 = vpack.c.b16 %v296, %v294
    %v345 = vpack.c.b16 %v299, %v297
    %v346 = vpack.c.b16 %v300, %v298
    %v347 = vpack.c.b16 %v303, %v301
    %v348 = vpack.c.b16 %v304, %v302
    %v349 = vpack.c.b16 %v307, %v305
    %v350 = vpack.c.b16 %v308, %v306
    %v351 = vpack.c.b16 %v311, %v309
    %v352 = vpack.c.b16 %v312, %v310
    %v353 = vpack.c.b16 %v315, %v313
    %v354 = vpack.c.b16 %v316, %v314
    %v355 = vpack.c.b16 %v319, %v317
    %v356 = vpack.c.b16 %v320, %v318
    %v357 = vpack.c.b16 %v323, %v321
    %v358 = vpack.c.b16 %v324, %v322
    %v359 = vpack.c.b16 %v327, %v325
    %v360 = vpack.c.b16 %v328, %v326
    %393 = vmatprep.subr.bf16.mxu0 %v344
    %394 = vmatpush1.bf16.msra.mxu0 %v343
    %395 = vmatprep.subr.bf16.mxu0 %v342
    %396 = vmatpush1.bf16.msra.mxu0 %v341
    %397 = vmatprep.subr.bf16.mxu0 %v340
    %398 = vmatpush1.bf16.msra.mxu0 %v339
    %399 = vmatprep.subr.bf16.mxu0 %v338
    %400 = vmatpush1.bf16.msra.mxu0 %v337
    %401 = vmatprep.subr.bf16.mxu0 %v336
    %402 = vmatpush1.bf16.msra.mxu0 %v335
    %403 = vmatprep.subr.bf16.mxu0 %v334
    %404 = vmatpush1.bf16.msra.mxu0 %v333
    %405 = vmatprep.subr.bf16.mxu0 %v332
    %406 = vmatpush1.bf16.msra.mxu0 %v331
    %407 = vmatprep.subr.bf16.mxu0 %v330
    %408 = vmatpush1.bf16.msra.mxu0 %v329
    %409 = vmatprep.subr.bf16.mxu0 %v360
    %410 = vmatpush2.bf16.msra.mxu0 %v359
    %411 = vmatprep.subr.bf16.mxu0 %v358
    %412 = vmatpush2.bf16.msra.mxu0 %v357
    %413 = vmatprep.subr.bf16.mxu0 %v356
    %414 = vmatpush2.bf16.msra.mxu0 %v355
    %415 = vmatprep.subr.bf16.mxu0 %v354
    %416 = vmatpush2.bf16.msra.mxu0 %v353
    %417 = vmatprep.subr.bf16.mxu0 %v352
    %418 = vmatpush2.bf16.msra.mxu0 %v351
    %419 = vmatprep.subr.bf16.mxu0 %v350
    %420 = vmatpush2.bf16.msra.mxu0 %v349
    %421 = vmatprep.subr.bf16.mxu0 %v348
    %422 = vmatpush2.bf16.msra.mxu0 %v347
    %423 = vmatprep.subr.bf16.mxu0 %v346
    %424 = vmatpush2.bf16.msra.mxu0 %v345
    %425 = vmatprep.mubr.bf16.mxu0 %v230
    %426 = vmatmul.mubr.bf16.gmra.mxu0 %v229
    %v427 = vpop.f32.mrf.mxu0
    %v428 = vadd.f32 %v219, %v427
    %v429 = vpop.f32.mrf.mxu0
    %v430 = vadd.f32 %v223, %v429
    %v431 = vpop.f32.mrf.mxu0
    %v432 = vpop.f32.mrf.mxu0
    %433 = vdwg.mxu0
    %v434 = vmul.f32 %v428, 0.01
    %v435 = vmul.f32 %v430, 0.01
    %v436 = vmax.f32 %v428, %v434
    %v437 = vmax.f32 %v430, %v435
    %v438 = vpack.c.bf16 %v436, %v436
    %v439 = vpack.c.bf16 %v437, %v437
    %v440 = vld [vmem:[#allocation7] sm:$0xf]
    %v441 = vld [vmem:[#allocation7 + $0x4] sm:$0xf]
    %v442 = vld [vmem:[#allocation7 + $0x8] sm:$0xf]
    %v443 = vld [vmem:[#allocation7 + $0xc] sm:$0xf]
    %v444 = vld [vmem:[#allocation7 + $0x10] sm:$0xf]
    %v445 = vld [vmem:[#allocation7 + $0x14] sm:$0xf]
    %v446 = vld [vmem:[#allocation7 + $0x18] sm:$0xf]
    %v447 = vld [vmem:[#allocation7 + $0x1c] sm:$0xf]
    %v448 = vld [vmem:[#allocation7 + $0x20] sm:$0xf]
    %v449 = vld [vmem:[#allocation7 + $0x24] sm:$0xf]
    %v450 = vld [vmem:[#allocation7 + $0x28] sm:$0xf]
    %v451 = vld [vmem:[#allocation7 + $0x2c] sm:$0xf]
    %v452 = vld [vmem:[#allocation7 + $0x30] sm:$0xf]
    %v453 = vld [vmem:[#allocation7 + $0x34] sm:$0xf]
    %v454 = vld [vmem:[#allocation7 + $0x38] sm:$0xf]
    %v455 = vld [vmem:[#allocation7 + $0x3c] sm:$0xf]
    %v456 = vld [vmem:[#allocation7 + $0x40] sm:$0xf]
    %v457 = vld [vmem:[#allocation7 + $0x44] sm:$0xf]
    %v458 = vld [vmem:[#allocation7 + $0x48] sm:$0xf]
    %v459 = vld [vmem:[#allocation7 + $0x4c] sm:$0xf]
    %v460 = vld [vmem:[#allocation7 + $0x50] sm:$0xf]
    %v461 = vld [vmem:[#allocation7 + $0x54] sm:$0xf]
    %v462 = vld [vmem:[#allocation7 + $0x58] sm:$0xf]
    %v463 = vld [vmem:[#allocation7 + $0x5c] sm:$0xf]
    %v464 = vld [vmem:[#allocation7 + $0x60] sm:$0xf]
    %v465 = vld [vmem:[#allocation7 + $0x64] sm:$0xf]
    %v466 = vld [vmem:[#allocation7 + $0x68] sm:$0xf]
    %v467 = vld [vmem:[#allocation7 + $0x6c] sm:$0xf]
    %v468 = vld [vmem:[#allocation7 + $0x70] sm:$0xf]
    %v469 = vld [vmem:[#allocation7 + $0x74] sm:$0xf]
    %v470 = vld [vmem:[#allocation7 + $0x78] sm:$0xf]
    %v471 = vld [vmem:[#allocation7 + $0x7c] sm:$0xf]
    %v472 = vld [vmem:[%s4] sm:$0x1]
    %v474 = vlaneseq
    %v475 = vshrl.u32 %v474, 7
    %v476 = vsub.s32 0, %v475
    %v477 = vrot.slane %v472, %v476
    %v511 = vunpack.c.l.b16 %v440
    %v512 = vunpack.c.l.b16 %v441
    %v513 = vunpack.c.l.b16 %v442
    %v514 = vunpack.c.l.b16 %v443
    %v515 = vunpack.c.l.b16 %v444
    %v516 = vunpack.c.l.b16 %v445
    %v517 = vunpack.c.l.b16 %v446
    %v518 = vunpack.c.l.b16 %v447
    %v519 = vunpack.c.l.b16 %v448
    %v520 = vunpack.c.l.b16 %v449
    %v521 = vunpack.c.l.b16 %v450
    %v522 = vunpack.c.l.b16 %v451
    %v523 = vunpack.c.l.b16 %v452
    %v524 = vunpack.c.l.b16 %v453
    %v525 = vunpack.c.l.b16 %v454
    %v526 = vunpack.c.l.b16 %v455
    %v527 = vunpack.c.l.b16 %v456
    %v528 = vunpack.c.l.b16 %v457
    %v529 = vunpack.c.l.b16 %v458
    %v530 = vunpack.c.l.b16 %v459
    %v531 = vunpack.c.l.b16 %v460
    %v532 = vunpack.c.l.b16 %v461
    %v533 = vunpack.c.l.b16 %v462
    %v534 = vunpack.c.l.b16 %v463
    %v535 = vunpack.c.l.b16 %v464
    %v536 = vunpack.c.l.b16 %v465
    %v537 = vunpack.c.l.b16 %v466
    %v538 = vunpack.c.l.b16 %v467
    %v539 = vunpack.c.l.b16 %v468
    %v540 = vunpack.c.l.b16 %v469
    %v541 = vunpack.c.l.b16 %v470
    %v542 = vunpack.c.l.b16 %v471
    %v543 = vpack.c.b16 %v512, %v511
    %v544 = vpack.c.b16 %v514, %v513
    %v545 = vpack.c.b16 %v516, %v515
    %v546 = vpack.c.b16 %v518, %v517
    %v547 = vpack.c.b16 %v520, %v519
    %v548 = vpack.c.b16 %v522, %v521
    %v549 = vpack.c.b16 %v524, %v523
    %v550 = vpack.c.b16 %v526, %v525
    %v551 = vpack.c.b16 %v528, %v527
    %v552 = vpack.c.b16 %v530, %v529
    %v553 = vpack.c.b16 %v532, %v531
    %v554 = vpack.c.b16 %v534, %v533
    %v555 = vpack.c.b16 %v536, %v535
    %v556 = vpack.c.b16 %v538, %v537
    %v557 = vpack.c.b16 %v540, %v539
    %v558 = vpack.c.b16 %v542, %v541
    %575 = vmatprep.subr.bf16.mxu0 0
    %576 = vmatpush1.bf16.msra.mxu0 %v550
    %577 = vmatprep.subr.bf16.mxu0 0
    %578 = vmatpush1.bf16.msra.mxu0 %v549
    %579 = vmatprep.subr.bf16.mxu0 0
    %580 = vmatpush1.bf16.msra.mxu0 %v548
    %581 = vmatprep.subr.bf16.mxu0 0
    %582 = vmatpush1.bf16.msra.mxu0 %v547
    %583 = vmatprep.subr.bf16.mxu0 0
    %584 = vmatpush1.bf16.msra.mxu0 %v546
    %585 = vmatprep.subr.bf16.mxu0 0
    %586 = vmatpush1.bf16.msra.mxu0 %v545
    %587 = vmatprep.subr.bf16.mxu0 0
    %588 = vmatpush1.bf16.msra.mxu0 %v544
    %589 = vmatprep.subr.bf16.mxu0 0
    %590 = vmatpush1.bf16.msra.mxu0 %v543
    %591 = vmatprep.subr.bf16.mxu0 0
    %592 = vmatpush2.bf16.msra.mxu0 %v558
    %593 = vmatprep.subr.bf16.mxu0 0
    %594 = vmatpush2.bf16.msra.mxu0 %v557
    %595 = vmatprep.subr.bf16.mxu0 0
    %596 = vmatpush2.bf16.msra.mxu0 %v556
    %597 = vmatprep.subr.bf16.mxu0 0
    %598 = vmatpush2.bf16.msra.mxu0 %v555
    %599 = vmatprep.subr.bf16.mxu0 0
    %600 = vmatpush2.bf16.msra.mxu0 %v554
    %601 = vmatprep.subr.bf16.mxu0 0
    %602 = vmatpush2.bf16.msra.mxu0 %v553
    %603 = vmatprep.subr.bf16.mxu0 0
    %604 = vmatpush2.bf16.msra.mxu0 %v552
    %605 = vmatprep.subr.bf16.mxu0 0
    %606 = vmatpush2.bf16.msra.mxu0 %v551
    %607 = vmatprep.mubr.bf16.mxu0 %v439
    %608 = vmatmul.mubr.bf16.gmra.mxu0 %v438
    %v609 = vpop.f32.mrf.mxu0
    %v610 = vadd.f32 %v477, %v609
    %v611 = vpop.f32.mrf.mxu0
    %v612 = vpop.f32.mrf.mxu0
    %v613 = vpop.f32.mrf.mxu0
    %614 = vdwg.mxu0
    %v615 = vmul.f32 %v610, 0.01
    %v616 = vmax.f32 %v610, %v615
    %v617 = vpack.c.bf16 %v616, %v616
    %v618 = vld [vmem:[#allocation8] sm:$0xf]
    %v619 = vld [vmem:[#allocation8 + $0x4] sm:$0xf]
    %v620 = vld [vmem:[#allocation8 + $0x8] sm:$0xf]
    %v621 = vld [vmem:[#allocation8 + $0xc] sm:$0xf]
    %v622 = vld [vmem:[#allocation8 + $0x10] sm:$0xf]
    %v623 = vld [vmem:[#allocation8 + $0x14] sm:$0xf]
    %v624 = vld [vmem:[#allocation8 + $0x18] sm:$0xf]
    %v625 = vld [vmem:[#allocation8 + $0x1c] sm:$0xf]
    %v626 = vld [vmem:[#allocation8 + $0x20] sm:$0xf]
    %v627 = vld [vmem:[#allocation8 + $0x24] sm:$0xf]
    %v628 = vld [vmem:[#allocation8 + $0x28] sm:$0xf]
    %v629 = vld [vmem:[#allocation8 + $0x2c] sm:$0xf]
    %v630 = vld [vmem:[#allocation8 + $0x30] sm:$0xf]
    %v631 = vld [vmem:[#allocation8 + $0x34] sm:$0xf]
    %v632 = vld [vmem:[#allocation8 + $0x38] sm:$0xf]
    %v633 = vld [vmem:[#allocation8 + $0x3c] sm:$0xf]
    %v634 = vld [vmem:[%s6] sm:$0x1]
    %v636 = vlaneseq
    %v637 = vshrl.u32 %v636, 7
    %v638 = vsub.s32 0, %v637
    %v639 = vrot.slane %v634, %v638
    %v657 = vunpack.c.l.b16 %v618
    %v658 = vunpack.c.l.b16 %v619
    %v659 = vunpack.c.l.b16 %v620
    %v660 = vunpack.c.l.b16 %v621
    %v661 = vunpack.c.l.b16 %v622
    %v662 = vunpack.c.l.b16 %v623
    %v663 = vunpack.c.l.b16 %v624
    %v664 = vunpack.c.l.b16 %v625
    %v665 = vunpack.c.l.b16 %v626
    %v666 = vunpack.c.l.b16 %v627
    %v667 = vunpack.c.l.b16 %v628
    %v668 = vunpack.c.l.b16 %v629
    %v669 = vunpack.c.l.b16 %v630
    %v670 = vunpack.c.l.b16 %v631
    %v671 = vunpack.c.l.b16 %v632
    %v672 = vunpack.c.l.b16 %v633
    %v673 = vpack.c.b16 %v658, %v657
    %v674 = vpack.c.b16 %v660, %v659
    %v675 = vpack.c.b16 %v662, %v661
    %v676 = vpack.c.b16 %v664, %v663
    %v677 = vpack.c.b16 %v666, %v665
    %v678 = vpack.c.b16 %v668, %v667
    %v679 = vpack.c.b16 %v670, %v669
    %v680 = vpack.c.b16 %v672, %v671
    %689 = vmatprep.subr.bf16.mxu0 0
    %690 = vmatpush1.bf16.msra.mxu0 %v680
    %691 = vmatprep.subr.bf16.mxu0 0
    %692 = vmatpush1.bf16.msra.mxu0 %v679
    %693 = vmatprep.subr.bf16.mxu0 0
    %694 = vmatpush1.bf16.msra.mxu0 %v678
    %695 = vmatprep.subr.bf16.mxu0 0
    %696 = vmatpush1.bf16.msra.mxu0 %v677
    %697 = vmatprep.subr.bf16.mxu0 0
    %698 = vmatpush1.bf16.msra.mxu0 %v676
    %699 = vmatprep.subr.bf16.mxu0 0
    %700 = vmatpush1.bf16.msra.mxu0 %v675
    %701 = vmatprep.subr.bf16.mxu0 0
    %702 = vmatpush1.bf16.msra.mxu0 %v674
    %703 = vmatprep.subr.bf16.mxu0 0
    %704 = vmatpush1.bf16.msra.mxu0 %v673
    %705 = vmatprep.subr.bf16.mxu0 0
    %706 = vmatpush2.bf16.msra.mxu0 0
    %707 = vmatprep.subr.bf16.mxu0 0
    %708 = vmatpush2.bf16.msra.mxu0 0
    %709 = vmatprep.subr.bf16.mxu0 0
    %710 = vmatpush2.bf16.msra.mxu0 0
    %711 = vmatprep.subr.bf16.mxu0 0
    %712 = vmatpush2.bf16.msra.mxu0 0
    %713 = vmatprep.subr.bf16.mxu0 0
    %714 = vmatpush2.bf16.msra.mxu0 0
    %715 = vmatprep.subr.bf16.mxu0 0
    %716 = vmatpush2.bf16.msra.mxu0 0
    %717 = vmatprep.subr.bf16.mxu0 0
    %718 = vmatpush2.bf16.msra.mxu0 0
    %719 = vmatprep.subr.bf16.mxu0 0
    %720 = vmatpush2.bf16.msra.mxu0 0
    %721 = vmatprep.mubr.bf16.mxu0 0
    %722 = vmatmul.mubr.bf16.gmra.mxu0 %v617
    %v723 = vpop.f32.mrf.mxu0
    %v724 = vadd.f32 %v639, %v723
    %v725 = vpop.f32.mrf.mxu0
    %v726 = vpop.f32.mrf.mxu0
    %v727 = vpop.f32.mrf.mxu0
    %728 = vdwg.mxu0
    %v729 = vmul.f32 %v724, 0.01
    %v730 = vmax.f32 %v724, %v729
    %v731 = vpack.c.bf16 %v730, %v730
    %v732 = vld [vmem:[#allocation10] sm:$0xf]
    %v733 = vld [vmem:[#allocation10 + $0x4] sm:$0xf]
    %v734 = vld [vmem:[#allocation10 + $0x8] sm:$0xf]
    %v735 = vld [vmem:[#allocation10 + $0xc] sm:$0xf]
    %v736 = vld [vmem:[#allocation10 + $0x10] sm:$0xf]
    %v737 = vld [vmem:[#allocation10 + $0x14] sm:$0xf]
    %v738 = vld [vmem:[#allocation10 + $0x18] sm:$0xf]
    %v739 = vld [vmem:[#allocation10 + $0x1c] sm:$0xf]
    %v740 = vld [vmem:[#allocation10 + $0x20] sm:$0xf]
    %v741 = vld [vmem:[#allocation10 + $0x24] sm:$0xf]
    %v742 = vld [vmem:[#allocation10 + $0x28] sm:$0xf]
    %v743 = vld [vmem:[#allocation10 + $0x2c] sm:$0xf]
    %v744 = vld [vmem:[#allocation10 + $0x30] sm:$0xf]
    %v745 = vld [vmem:[#allocation10 + $0x34] sm:$0xf]
    %v746 = vld [vmem:[#allocation10 + $0x38] sm:$0xf]
    %v747 = vld [vmem:[#allocation10 + $0x3c] sm:$0xf]
    %v748 = vld [vmem:[%s8] sm:$0x1]
    %v750 = vlaneseq
    %v751 = vshrl.u32 %v750, 7
    %v752 = vsub.s32 0, %v751
    %v753 = vrot.slane %v748, %v752
    %v771 = vunpack.c.l.b16 %v732
    %v772 = vunpack.c.l.b16 %v733
    %v773 = vunpack.c.l.b16 %v734
    %v774 = vunpack.c.l.b16 %v735
    %v775 = vunpack.c.l.b16 %v736
    %v776 = vunpack.c.l.b16 %v737
    %v777 = vunpack.c.l.b16 %v738
    %v778 = vunpack.c.l.b16 %v739
    %v779 = vunpack.c.l.b16 %v740
    %v780 = vunpack.c.l.b16 %v741
    %v781 = vunpack.c.l.b16 %v742
    %v782 = vunpack.c.l.b16 %v743
    %v783 = vunpack.c.l.b16 %v744
    %v784 = vunpack.c.l.b16 %v745
    %v785 = vunpack.c.l.b16 %v746
    %v786 = vunpack.c.l.b16 %v747
    %v787 = vpack.c.b16 %v772, %v771
    %v788 = vpack.c.b16 %v774, %v773
    %v789 = vpack.c.b16 %v776, %v775
    %v790 = vpack.c.b16 %v778, %v777
    %v791 = vpack.c.b16 %v780, %v779
    %v792 = vpack.c.b16 %v782, %v781
    %v793 = vpack.c.b16 %v784, %v783
    %v794 = vpack.c.b16 %v786, %v785
    %803 = vmatprep.subr.bf16.mxu0 0
    %804 = vmatpush1.bf16.msra.mxu0 %v794
    %805 = vmatprep.subr.bf16.mxu0 0
    %806 = vmatpush1.bf16.msra.mxu0 %v793
    %807 = vmatprep.subr.bf16.mxu0 0
    %808 = vmatpush1.bf16.msra.mxu0 %v792
    %809 = vmatprep.subr.bf16.mxu0 0
    %810 = vmatpush1.bf16.msra.mxu0 %v791
    %811 = vmatprep.subr.bf16.mxu0 0
    %812 = vmatpush1.bf16.msra.mxu0 %v790
    %813 = vmatprep.subr.bf16.mxu0 0
    %814 = vmatpush1.bf16.msra.mxu0 %v789
    %815 = vmatprep.subr.bf16.mxu0 0
    %816 = vmatpush1.bf16.msra.mxu0 %v788
    %817 = vmatprep.subr.bf16.mxu0 0
    %818 = vmatpush1.bf16.msra.mxu0 %v787
    %819 = vmatprep.subr.bf16.mxu0 0
    %820 = vmatpush2.bf16.msra.mxu0 0
    %821 = vmatprep.subr.bf16.mxu0 0
    %822 = vmatpush2.bf16.msra.mxu0 0
    %823 = vmatprep.subr.bf16.mxu0 0
    %824 = vmatpush2.bf16.msra.mxu0 0
    %825 = vmatprep.subr.bf16.mxu0 0
    %826 = vmatpush2.bf16.msra.mxu0 0
    %827 = vmatprep.subr.bf16.mxu0 0
    %828 = vmatpush2.bf16.msra.mxu0 0
    %829 = vmatprep.subr.bf16.mxu0 0
    %830 = vmatpush2.bf16.msra.mxu0 0
    %831 = vmatprep.subr.bf16.mxu0 0
    %832 = vmatpush2.bf16.msra.mxu0 0
    %833 = vmatprep.subr.bf16.mxu0 0
    %834 = vmatpush2.bf16.msra.mxu0 0
    %835 = vmatprep.mubr.bf16.mxu0 0
    %836 = vmatmul.mubr.bf16.gmra.mxu0 %v731
    %v837 = vpop.f32.mrf.mxu0
    %v838 = vadd.f32 %v753, %v837
    %v839 = vpop.f32.mrf.mxu0
    %v840 = vpop.f32.mrf.mxu0
    %v841 = vpop.f32.mrf.mxu0
    %842 = vdwg.mxu0
    %v843 = vpack.c.bf16 %v838, %v838
    %v844 = vld [vmem:[#allocation11] sm:$0xf]
    %v845 = vld [vmem:[#allocation11 + $0x4] sm:$0xf]
    %v846 = vld [vmem:[#allocation11 + $0x8] sm:$0xf]
    %v847 = vld [vmem:[#allocation11 + $0xc] sm:$0xf]
    %v848 = vld [vmem:[#allocation11 + $0x10] sm:$0xf]
    %v849 = vld [vmem:[#allocation11 + $0x14] sm:$0xf]
    %v850 = vld [vmem:[#allocation11 + $0x18] sm:$0xf]
    %v851 = vld [vmem:[#allocation11 + $0x1c] sm:$0xf]
    %v852 = vld [vmem:[#allocation11 + $0x20] sm:$0xf]
    %v853 = vld [vmem:[#allocation11 + $0x24] sm:$0xf]
    %v854 = vld [vmem:[#allocation11 + $0x28] sm:$0xf]
    %v855 = vld [vmem:[#allocation11 + $0x2c] sm:$0xf]
    %v856 = vld [vmem:[#allocation11 + $0x30] sm:$0xf]
    %v857 = vld [vmem:[#allocation11 + $0x34] sm:$0xf]
    %v858 = vld [vmem:[#allocation11 + $0x38] sm:$0xf]
    %v859 = vld [vmem:[#allocation11 + $0x3c] sm:$0xf]
    %v860 = vld [vmem:[%s10] sm:$0x1]
    %v862 = vlaneseq
    %v863 = vshrl.u32 %v862, 7
    %v864 = vsub.s32 0, %v863
    %v865 = vrot.slane %v860, %v864
    %v883 = vunpack.c.l.b16 %v844
    %v884 = vunpack.c.l.b16 %v845
    %v885 = vunpack.c.l.b16 %v846
    %v886 = vunpack.c.l.b16 %v847
    %v887 = vunpack.c.l.b16 %v848
    %v888 = vunpack.c.l.b16 %v849
    %v889 = vunpack.c.l.b16 %v850
    %v890 = vunpack.c.l.b16 %v851
    %v891 = vunpack.c.l.b16 %v852
    %v892 = vunpack.c.l.b16 %v853
    %v893 = vunpack.c.l.b16 %v854
    %v894 = vunpack.c.l.b16 %v855
    %v895 = vunpack.c.l.b16 %v856
    %v896 = vunpack.c.l.b16 %v857
    %v897 = vunpack.c.l.b16 %v858
    %v898 = vunpack.c.l.b16 %v859
    %v899 = vpack.c.b16 %v884, %v883
    %v900 = vpack.c.b16 %v886, %v885
    %v901 = vpack.c.b16 %v888, %v887
    %v902 = vpack.c.b16 %v890, %v889
    %v903 = vpack.c.b16 %v892, %v891
    %v904 = vpack.c.b16 %v894, %v893
    %v905 = vpack.c.b16 %v896, %v895
    %v906 = vpack.c.b16 %v898, %v897
    %915 = vmatprep.subr.bf16.mxu0 0
    %916 = vmatpush1.bf16.msra.mxu0 %v906
    %917 = vmatprep.subr.bf16.mxu0 0
    %918 = vmatpush1.bf16.msra.mxu0 %v905
    %919 = vmatprep.subr.bf16.mxu0 0
    %920 = vmatpush1.bf16.msra.mxu0 %v904
    %921 = vmatprep.subr.bf16.mxu0 0
    %922 = vmatpush1.bf16.msra.mxu0 %v903
    %923 = vmatprep.subr.bf16.mxu0 0
    %924 = vmatpush1.bf16.msra.mxu0 %v902
    %925 = vmatprep.subr.bf16.mxu0 0
    %926 = vmatpush1.bf16.msra.mxu0 %v901
    %927 = vmatprep.subr.bf16.mxu0 0
    %928 = vmatpush1.bf16.msra.mxu0 %v900
    %929 = vmatprep.subr.bf16.mxu0 0
    %930 = vmatpush1.bf16.msra.mxu0 %v899
    %931 = vmatprep.subr.bf16.mxu0 0
    %932 = vmatpush2.bf16.msra.mxu0 0
    %933 = vmatprep.subr.bf16.mxu0 0
    %934 = vmatpush2.bf16.msra.mxu0 0
    %935 = vmatprep.subr.bf16.mxu0 0
    %936 = vmatpush2.bf16.msra.mxu0 0
    %937 = vmatprep.subr.bf16.mxu0 0
    %938 = vmatpush2.bf16.msra.mxu0 0
    %939 = vmatprep.subr.bf16.mxu0 0
    %940 = vmatpush2.bf16.msra.mxu0 0
    %941 = vmatprep.subr.bf16.mxu0 0
    %942 = vmatpush2.bf16.msra.mxu0 0
    %943 = vmatprep.subr.bf16.mxu0 0
    %944 = vmatpush2.bf16.msra.mxu0 0
    %945 = vmatprep.subr.bf16.mxu0 0
    %946 = vmatpush2.bf16.msra.mxu0 0
    %947 = vmatprep.mubr.bf16.mxu0 0
    %948 = vmatmul.mubr.bf16.gmra.mxu0 %v843
    %v949 = vpop.f32.mrf.mxu0
    %v950 = vadd.f32 %v865, %v949
    %v951 = vpop.f32.mrf.mxu0
    %v952 = vpop.f32.mrf.mxu0
    %v953 = vpop.f32.mrf.mxu0
    %954 = vdwg.mxu0
    %v955 = vmul.f32 %v950, 0.01
    %v956 = vmax.f32 %v950, %v955
    %v957 = vpack.c.bf16 %v956, %v956
    %v958 = vld [vmem:[#allocation13] sm:$0xf]
    %v959 = vld [vmem:[#allocation13 + $0x4] sm:$0xf]
    %v960 = vld [vmem:[#allocation13 + $0x8] sm:$0xf]
    %v961 = vld [vmem:[#allocation13 + $0xc] sm:$0xf]
    %v962 = vld [vmem:[#allocation13 + $0x10] sm:$0xf]
    %v963 = vld [vmem:[#allocation13 + $0x14] sm:$0xf]
    %v964 = vld [vmem:[#allocation13 + $0x18] sm:$0xf]
    %v965 = vld [vmem:[#allocation13 + $0x1c] sm:$0xf]
    %v966 = vld [vmem:[#allocation13 + $0x20] sm:$0xf]
    %v967 = vld [vmem:[#allocation13 + $0x24] sm:$0xf]
    %v968 = vld [vmem:[#allocation13 + $0x28] sm:$0xf]
    %v969 = vld [vmem:[#allocation13 + $0x2c] sm:$0xf]
    %v970 = vld [vmem:[#allocation13 + $0x30] sm:$0xf]
    %v971 = vld [vmem:[#allocation13 + $0x34] sm:$0xf]
    %v972 = vld [vmem:[#allocation13 + $0x38] sm:$0xf]
    %v973 = vld [vmem:[#allocation13 + $0x3c] sm:$0xf]
    %v974 = vld [vmem:[%s12] sm:$0x1]
    %v976 = vlaneseq
    %v977 = vshrl.u32 %v976, 7
    %v978 = vsub.s32 0, %v977
    %v979 = vrot.slane %v974, %v978
    %v997 = vunpack.c.l.b16 %v958
    %v998 = vunpack.c.l.b16 %v959
    %v999 = vunpack.c.l.b16 %v960
    %v1000 = vunpack.c.l.b16 %v961
    %v1001 = vunpack.c.l.b16 %v962
    %v1002 = vunpack.c.l.b16 %v963
    %v1003 = vunpack.c.l.b16 %v964
    %v1004 = vunpack.c.l.b16 %v965
    %v1005 = vunpack.c.l.b16 %v966
    %v1006 = vunpack.c.l.b16 %v967
    %v1007 = vunpack.c.l.b16 %v968
    %v1008 = vunpack.c.l.b16 %v969
    %v1009 = vunpack.c.l.b16 %v970
    %v1010 = vunpack.c.l.b16 %v971
    %v1011 = vunpack.c.l.b16 %v972
    %v1012 = vunpack.c.l.b16 %v973
    %v1013 = vpack.c.b16 %v998, %v997
    %v1014 = vpack.c.b16 %v1000, %v999
    %v1015 = vpack.c.b16 %v1002, %v1001
    %v1016 = vpack.c.b16 %v1004, %v1003
    %v1017 = vpack.c.b16 %v1006, %v1005
    %v1018 = vpack.c.b16 %v1008, %v1007
    %v1019 = vpack.c.b16 %v1010, %v1009
    %v1020 = vpack.c.b16 %v1012, %v1011
    %1029 = vmatprep.subr.bf16.mxu0 0
    %1030 = vmatpush1.bf16.msra.mxu0 %v1020
    %1031 = vmatprep.subr.bf16.mxu0 0
    %1032 = vmatpush1.bf16.msra.mxu0 %v1019
    %1033 = vmatprep.subr.bf16.mxu0 0
    %1034 = vmatpush1.bf16.msra.mxu0 %v1018
    %1035 = vmatprep.subr.bf16.mxu0 0
    %1036 = vmatpush1.bf16.msra.mxu0 %v1017
    %1037 = vmatprep.subr.bf16.mxu0 0
    %1038 = vmatpush1.bf16.msra.mxu0 %v1016
    %1039 = vmatprep.subr.bf16.mxu0 0
    %1040 = vmatpush1.bf16.msra.mxu0 %v1015
    %1041 = vmatprep.subr.bf16.mxu0 0
    %1042 = vmatpush1.bf16.msra.mxu0 %v1014
    %1043 = vmatprep.subr.bf16.mxu0 0
    %1044 = vmatpush1.bf16.msra.mxu0 %v1013
    %1045 = vmatprep.subr.bf16.mxu0 0
    %1046 = vmatpush2.bf16.msra.mxu0 0
    %1047 = vmatprep.subr.bf16.mxu0 0
    %1048 = vmatpush2.bf16.msra.mxu0 0
    %1049 = vmatprep.subr.bf16.mxu0 0
    %1050 = vmatpush2.bf16.msra.mxu0 0
    %1051 = vmatprep.subr.bf16.mxu0 0
    %1052 = vmatpush2.bf16.msra.mxu0 0
    %1053 = vmatprep.subr.bf16.mxu0 0
    %1054 = vmatpush2.bf16.msra.mxu0 0
    %1055 = vmatprep.subr.bf16.mxu0 0
    %1056 = vmatpush2.bf16.msra.mxu0 0
    %1057 = vmatprep.subr.bf16.mxu0 0
    %1058 = vmatpush2.bf16.msra.mxu0 0
    %1059 = vmatprep.subr.bf16.mxu0 0
    %1060 = vmatpush2.bf16.msra.mxu0 0
    %1061 = vmatprep.mubr.bf16.mxu0 0
    %1062 = vmatmul.mubr.bf16.gmra.mxu0 %v957
    %v1063 = vpop.f32.mrf.mxu0
    %v1064 = vadd.f32 %v979, %v1063
    %v1065 = vpop.f32.mrf.mxu0
    %v1066 = vpop.f32.mrf.mxu0
    %v1067 = vpop.f32.mrf.mxu0
    %1068 = vdwg.mxu0
    %v1069 = vmul.f32 %v1064, 0.01
    %v1070 = vmax.f32 %v1064, %v1069
    %v1071 = vpack.c.bf16 %v1070, %v1070
    %v1072 = vld [vmem:[#allocation14] sm:$0xff]
    %v1073 = vld [vmem:[#allocation14 + $0x8] sm:$0xff]
    %v1074 = vld [vmem:[#allocation14 + $0x10] sm:$0xff]
    %v1075 = vld [vmem:[#allocation14 + $0x18] sm:$0xff]
    %v1076 = vld [vmem:[#allocation14 + $0x20] sm:$0xff]
    %v1077 = vld [vmem:[#allocation14 + $0x28] sm:$0xff]
    %v1078 = vld [vmem:[#allocation14 + $0x30] sm:$0xff]
    %v1079 = vld [vmem:[#allocation14 + $0x38] sm:$0xff]
    %v1080 = vld [vmem:[#allocation14 + $0x40] sm:$0xff]
    %v1081 = vld [vmem:[#allocation14 + $0x48] sm:$0xff]
    %v1082 = vld [vmem:[#allocation14 + $0x50] sm:$0xff]
    %v1083 = vld [vmem:[#allocation14 + $0x58] sm:$0xff]
    %v1084 = vld [vmem:[#allocation14 + $0x60] sm:$0xff]
    %v1085 = vld [vmem:[#allocation14 + $0x68] sm:$0xff]
    %v1086 = vld [vmem:[#allocation14 + $0x70] sm:$0xff]
    %v1087 = vld [vmem:[#allocation14 + $0x78] sm:$0xff]
    %v1088 = vld [vmem:[%s14] sm:$0x3]
    %v1090 = vlaneseq
    %v1091 = vshrl.u32 %v1090, 7
    %v1092 = vsub.s32 0, %v1091
    %v1093 = vrot.slane %v1088, %v1092
    %v1094 = vlaneseq
    %v1095 = vshrl.u32 %v1094, 7
    %v1096 = vsub.s32 1, %v1095
    %v1097 = vrot.slane %v1088, %v1096
    %v1116 = vunpack.c.l.b16 %v1072
    %v1117 = vunpack.c.h.b16 %v1072
    %v1118 = vunpack.c.l.b16 %v1073
    %v1119 = vunpack.c.h.b16 %v1073
    %v1120 = vunpack.c.l.b16 %v1074
    %v1121 = vunpack.c.h.b16 %v1074
    %v1122 = vunpack.c.l.b16 %v1075
    %v1123 = vunpack.c.h.b16 %v1075
    %v1124 = vunpack.c.l.b16 %v1076
    %v1125 = vunpack.c.h.b16 %v1076
    %v1126 = vunpack.c.l.b16 %v1077
    %v1127 = vunpack.c.h.b16 %v1077
    %v1128 = vunpack.c.l.b16 %v1078
    %v1129 = vunpack.c.h.b16 %v1078
    %v1130 = vunpack.c.l.b16 %v1079
    %v1131 = vunpack.c.h.b16 %v1079
    %v1132 = vunpack.c.l.b16 %v1080
    %v1133 = vunpack.c.h.b16 %v1080
    %v1134 = vunpack.c.l.b16 %v1081
    %v1135 = vunpack.c.h.b16 %v1081
    %v1136 = vunpack.c.l.b16 %v1082
    %v1137 = vunpack.c.h.b16 %v1082
    %v1138 = vunpack.c.l.b16 %v1083
    %v1139 = vunpack.c.h.b16 %v1083
    %v1140 = vunpack.c.l.b16 %v1084
    %v1141 = vunpack.c.h.b16 %v1084
    %v1142 = vunpack.c.l.b16 %v1085
    %v1143 = vunpack.c.h.b16 %v1085
    %v1144 = vunpack.c.l.b16 %v1086
    %v1145 = vunpack.c.h.b16 %v1086
    %v1146 = vunpack.c.l.b16 %v1087
    %v1147 = vunpack.c.h.b16 %v1087
    %v1148 = vpack.c.b16 %v1118, %v1116
    %v1149 = vpack.c.b16 %v1119, %v1117
    %v1150 = vpack.c.b16 %v1122, %v1120
    %v1151 = vpack.c.b16 %v1123, %v1121
    %v1152 = vpack.c.b16 %v1126, %v1124
    %v1153 = vpack.c.b16 %v1127, %v1125
    %v1154 = vpack.c.b16 %v1130, %v1128
    %v1155 = vpack.c.b16 %v1131, %v1129
    %v1156 = vpack.c.b16 %v1134, %v1132
    %v1157 = vpack.c.b16 %v1135, %v1133
    %v1158 = vpack.c.b16 %v1138, %v1136
    %v1159 = vpack.c.b16 %v1139, %v1137
    %v1160 = vpack.c.b16 %v1142, %v1140
    %v1161 = vpack.c.b16 %v1143, %v1141
    %v1162 = vpack.c.b16 %v1146, %v1144
    %v1163 = vpack.c.b16 %v1147, %v1145
    %1180 = vmatprep.subr.bf16.mxu0 %v1163
    %1181 = vmatpush1.bf16.msra.mxu0 %v1162
    %1182 = vmatprep.subr.bf16.mxu0 %v1161
    %1183 = vmatpush1.bf16.msra.mxu0 %v1160
    %1184 = vmatprep.subr.bf16.mxu0 %v1159
    %1185 = vmatpush1.bf16.msra.mxu0 %v1158
    %1186 = vmatprep.subr.bf16.mxu0 %v1157
    %1187 = vmatpush1.bf16.msra.mxu0 %v1156
    %1188 = vmatprep.subr.bf16.mxu0 %v1155
    %1189 = vmatpush1.bf16.msra.mxu0 %v1154
    %1190 = vmatprep.subr.bf16.mxu0 %v1153
    %1191 = vmatpush1.bf16.msra.mxu0 %v1152
    %1192 = vmatprep.subr.bf16.mxu0 %v1151
    %1193 = vmatpush1.bf16.msra.mxu0 %v1150
    %1194 = vmatprep.subr.bf16.mxu0 %v1149
    %1195 = vmatpush1.bf16.msra.mxu0 %v1148
    %1196 = vmatprep.subr.bf16.mxu0 0
    %1197 = vmatpush2.bf16.msra.mxu0 0
    %1198 = vmatprep.subr.bf16.mxu0 0
    %1199 = vmatpush2.bf16.msra.mxu0 0
    %1200 = vmatprep.subr.bf16.mxu0 0
    %1201 = vmatpush2.bf16.msra.mxu0 0
    %1202 = vmatprep.subr.bf16.mxu0 0
    %1203 = vmatpush2.bf16.msra.mxu0 0
    %1204 = vmatprep.subr.bf16.mxu0 0
    %1205 = vmatpush2.bf16.msra.mxu0 0
    %1206 = vmatprep.subr.bf16.mxu0 0
    %1207 = vmatpush2.bf16.msra.mxu0 0
    %1208 = vmatprep.subr.bf16.mxu0 0
    %1209 = vmatpush2.bf16.msra.mxu0 0
    %1210 = vmatprep.subr.bf16.mxu0 0
    %1211 = vmatpush2.bf16.msra.mxu0 0
    %1212 = vmatprep.mubr.bf16.mxu0 0
    %1213 = vmatmul.mubr.bf16.gmra.mxu0 %v1071
    %v1214 = vpop.f32.mrf.mxu0
    %v1215 = vadd.f32 %v1093, %v1214
    %v1216 = vpop.f32.mrf.mxu0
    %v1217 = vadd.f32 %v1097, %v1216
    %v1218 = vpop.f32.mrf.mxu0
    %v1219 = vpop.f32.mrf.mxu0
    %1220 = vdwg.mxu0
    %v1221 = vmul.f32 %v1215, 0.01
    %v1222 = vmul.f32 %v1217, 0.01
    %v1223 = vmax.f32 %v1215, %v1221
    %v1224 = vmax.f32 %v1217, %v1222
    %v1225 = vpack.c.bf16 %v1223, %v1223
    %v1226 = vpack.c.bf16 %v1224, %v1224
    %v1227 = vld [vmem:[#allocation16] sm:$0xff]
    %v1228 = vld [vmem:[#allocation16 + $0x8] sm:$0xff]
    %v1229 = vld [vmem:[#allocation16 + $0x10] sm:$0xff]
    %v1230 = vld [vmem:[#allocation16 + $0x18] sm:$0xff]
    %v1231 = vld [vmem:[#allocation16 + $0x20] sm:$0xff]
    %v1232 = vld [vmem:[#allocation16 + $0x28] sm:$0xff]
    %v1233 = vld [vmem:[#allocation16 + $0x30] sm:$0xff]
    %v1234 = vld [vmem:[#allocation16 + $0x38] sm:$0xff]
    %v1235 = vld [vmem:[#allocation16 + $0x40] sm:$0xff]
    %v1236 = vld [vmem:[#allocation16 + $0x48] sm:$0xff]
    %v1237 = vld [vmem:[#allocation16 + $0x50] sm:$0xff]
    %v1238 = vld [vmem:[#allocation16 + $0x58] sm:$0xff]
    %v1239 = vld [vmem:[#allocation16 + $0x60] sm:$0xff]
    %v1240 = vld [vmem:[#allocation16 + $0x68] sm:$0xff]
    %v1241 = vld [vmem:[#allocation16 + $0x70] sm:$0xff]
    %v1242 = vld [vmem:[#allocation16 + $0x78] sm:$0xff]
    %v1243 = vld [vmem:[#allocation16 + $0x80] sm:$0xff]
    %v1244 = vld [vmem:[#allocation16 + $0x88] sm:$0xff]
    %v1245 = vld [vmem:[#allocation16 + $0x90] sm:$0xff]
    %v1246 = vld [vmem:[#allocation16 + $0x98] sm:$0xff]
    %v1247 = vld [vmem:[#allocation16 + $0xa0] sm:$0xff]
    %v1248 = vld [vmem:[#allocation16 + $0xa8] sm:$0xff]
    %v1249 = vld [vmem:[#allocation16 + $0xb0] sm:$0xff]
    %v1250 = vld [vmem:[#allocation16 + $0xb8] sm:$0xff]
    %v1251 = vld [vmem:[#allocation16 + $0xc0] sm:$0xff]
    %v1252 = vld [vmem:[#allocation16 + $0xc8] sm:$0xff]
    %v1253 = vld [vmem:[#allocation16 + $0xd0] sm:$0xff]
    %v1254 = vld [vmem:[#allocation16 + $0xd8] sm:$0xff]
    %v1255 = vld [vmem:[#allocation16 + $0xe0] sm:$0xff]
    %v1256 = vld [vmem:[#allocation16 + $0xe8] sm:$0xff]
    %v1257 = vld [vmem:[#allocation16 + $0xf0] sm:$0xff]
    %v1258 = vld [vmem:[#allocation16 + $0xf8] sm:$0xff]
    %v1259 = vld [vmem:[%s16] sm:$0x3]
    %v1261 = vlaneseq
    %v1262 = vshrl.u32 %v1261, 7
    %v1263 = vsub.s32 0, %v1262
    %v1264 = vrot.slane %v1259, %v1263
    %v1265 = vlaneseq
    %v1266 = vshrl.u32 %v1265, 7
    %v1267 = vsub.s32 1, %v1266
    %v1268 = vrot.slane %v1259, %v1267
    %v1303 = vunpack.c.l.b16 %v1227
    %v1304 = vunpack.c.h.b16 %v1227
    %v1305 = vunpack.c.l.b16 %v1228
    %v1306 = vunpack.c.h.b16 %v1228
    %v1307 = vunpack.c.l.b16 %v1229
    %v1308 = vunpack.c.h.b16 %v1229
    %v1309 = vunpack.c.l.b16 %v1230
    %v1310 = vunpack.c.h.b16 %v1230
    %v1311 = vunpack.c.l.b16 %v1231
    %v1312 = vunpack.c.h.b16 %v1231
    %v1313 = vunpack.c.l.b16 %v1232
    %v1314 = vunpack.c.h.b16 %v1232
    %v1315 = vunpack.c.l.b16 %v1233
    %v1316 = vunpack.c.h.b16 %v1233
    %v1317 = vunpack.c.l.b16 %v1234
    %v1318 = vunpack.c.h.b16 %v1234
    %v1319 = vunpack.c.l.b16 %v1235
    %v1320 = vunpack.c.h.b16 %v1235
    %v1321 = vunpack.c.l.b16 %v1236
    %v1322 = vunpack.c.h.b16 %v1236
    %v1323 = vunpack.c.l.b16 %v1237
    %v1324 = vunpack.c.h.b16 %v1237
    %v1325 = vunpack.c.l.b16 %v1238
    %v1326 = vunpack.c.h.b16 %v1238
    %v1327 = vunpack.c.l.b16 %v1239
    %v1328 = vunpack.c.h.b16 %v1239
    %v1329 = vunpack.c.l.b16 %v1240
    %v1330 = vunpack.c.h.b16 %v1240
    %v1331 = vunpack.c.l.b16 %v1241
    %v1332 = vunpack.c.h.b16 %v1241
    %v1333 = vunpack.c.l.b16 %v1242
    %v1334 = vunpack.c.h.b16 %v1242
    %v1335 = vunpack.c.l.b16 %v1243
    %v1336 = vunpack.c.h.b16 %v1243
    %v1337 = vunpack.c.l.b16 %v1244
    %v1338 = vunpack.c.h.b16 %v1244
    %v1339 = vunpack.c.l.b16 %v1245
    %v1340 = vunpack.c.h.b16 %v1245
    %v1341 = vunpack.c.l.b16 %v1246
    %v1342 = vunpack.c.h.b16 %v1246
    %v1343 = vunpack.c.l.b16 %v1247
    %v1344 = vunpack.c.h.b16 %v1247
    %v1345 = vunpack.c.l.b16 %v1248
    %v1346 = vunpack.c.h.b16 %v1248
    %v1347 = vunpack.c.l.b16 %v1249
    %v1348 = vunpack.c.h.b16 %v1249
    %v1349 = vunpack.c.l.b16 %v1250
    %v1350 = vunpack.c.h.b16 %v1250
    %v1351 = vunpack.c.l.b16 %v1251
    %v1352 = vunpack.c.h.b16 %v1251
    %v1353 = vunpack.c.l.b16 %v1252
    %v1354 = vunpack.c.h.b16 %v1252
    %v1355 = vunpack.c.l.b16 %v1253
    %v1356 = vunpack.c.h.b16 %v1253
    %v1357 = vunpack.c.l.b16 %v1254
    %v1358 = vunpack.c.h.b16 %v1254
    %v1359 = vunpack.c.l.b16 %v1255
    %v1360 = vunpack.c.h.b16 %v1255
    %v1361 = vunpack.c.l.b16 %v1256
    %v1362 = vunpack.c.h.b16 %v1256
    %v1363 = vunpack.c.l.b16 %v1257
    %v1364 = vunpack.c.h.b16 %v1257
    %v1365 = vunpack.c.l.b16 %v1258
    %v1366 = vunpack.c.h.b16 %v1258
    %v1367 = vpack.c.b16 %v1305, %v1303
    %v1368 = vpack.c.b16 %v1306, %v1304
    %v1369 = vpack.c.b16 %v1309, %v1307
    %v1370 = vpack.c.b16 %v1310, %v1308
    %v1371 = vpack.c.b16 %v1313, %v1311
    %v1372 = vpack.c.b16 %v1314, %v1312
    %v1373 = vpack.c.b16 %v1317, %v1315
    %v1374 = vpack.c.b16 %v1318, %v1316
    %v1375 = vpack.c.b16 %v1321, %v1319
    %v1376 = vpack.c.b16 %v1322, %v1320
    %v1377 = vpack.c.b16 %v1325, %v1323
    %v1378 = vpack.c.b16 %v1326, %v1324
    %v1379 = vpack.c.b16 %v1329, %v1327
    %v1380 = vpack.c.b16 %v1330, %v1328
    %v1381 = vpack.c.b16 %v1333, %v1331
    %v1382 = vpack.c.b16 %v1334, %v1332
    %v1383 = vpack.c.b16 %v1337, %v1335
    %v1384 = vpack.c.b16 %v1338, %v1336
    %v1385 = vpack.c.b16 %v1341, %v1339
    %v1386 = vpack.c.b16 %v1342, %v1340
    %v1387 = vpack.c.b16 %v1345, %v1343
    %v1388 = vpack.c.b16 %v1346, %v1344
    %v1389 = vpack.c.b16 %v1349, %v1347
    %v1390 = vpack.c.b16 %v1350, %v1348
    %v1391 = vpack.c.b16 %v1353, %v1351
    %v1392 = vpack.c.b16 %v1354, %v1352
    %v1393 = vpack.c.b16 %v1357, %v1355
    %v1394 = vpack.c.b16 %v1358, %v1356
    %v1395 = vpack.c.b16 %v1361, %v1359
    %v1396 = vpack.c.b16 %v1362, %v1360
    %v1397 = vpack.c.b16 %v1365, %v1363
    %v1398 = vpack.c.b16 %v1366, %v1364
    %1431 = vmatprep.subr.bf16.mxu0 %v1382
    %1432 = vmatpush1.bf16.msra.mxu0 %v1381
    %1433 = vmatprep.subr.bf16.mxu0 %v1380
    %1434 = vmatpush1.bf16.msra.mxu0 %v1379
    %1435 = vmatprep.subr.bf16.mxu0 %v1378
    %1436 = vmatpush1.bf16.msra.mxu0 %v1377
    %1437 = vmatprep.subr.bf16.mxu0 %v1376
    %1438 = vmatpush1.bf16.msra.mxu0 %v1375
    %1439 = vmatprep.subr.bf16.mxu0 %v1374
    %1440 = vmatpush1.bf16.msra.mxu0 %v1373
    %1441 = vmatprep.subr.bf16.mxu0 %v1372
    %1442 = vmatpush1.bf16.msra.mxu0 %v1371
    %1443 = vmatprep.subr.bf16.mxu0 %v1370
    %1444 = vmatpush1.bf16.msra.mxu0 %v1369
    %1445 = vmatprep.subr.bf16.mxu0 %v1368
    %1446 = vmatpush1.bf16.msra.mxu0 %v1367
    %1447 = vmatprep.subr.bf16.mxu0 %v1398
    %1448 = vmatpush2.bf16.msra.mxu0 %v1397
    %1449 = vmatprep.subr.bf16.mxu0 %v1396
    %1450 = vmatpush2.bf16.msra.mxu0 %v1395
    %1451 = vmatprep.subr.bf16.mxu0 %v1394
    %1452 = vmatpush2.bf16.msra.mxu0 %v1393
    %1453 = vmatprep.subr.bf16.mxu0 %v1392
    %1454 = vmatpush2.bf16.msra.mxu0 %v1391
    %1455 = vmatprep.subr.bf16.mxu0 %v1390
    %1456 = vmatpush2.bf16.msra.mxu0 %v1389
    %1457 = vmatprep.subr.bf16.mxu0 %v1388
    %1458 = vmatpush2.bf16.msra.mxu0 %v1387
    %1459 = vmatprep.subr.bf16.mxu0 %v1386
    %1460 = vmatpush2.bf16.msra.mxu0 %v1385
    %1461 = vmatprep.subr.bf16.mxu0 %v1384
    %1462 = vmatpush2.bf16.msra.mxu0 %v1383
    %1463 = vmatprep.mubr.bf16.mxu0 %v1226
    %1464 = vmatmul.mubr.bf16.gmra.mxu0 %v1225
    %v1465 = vpop.f32.mrf.mxu0
    %v1466 = vadd.f32 %v1264, %v1465
    %v1467 = vpop.f32.mrf.mxu0
    %v1468 = vadd.f32 %v1268, %v1467
    %v1469 = vpop.f32.mrf.mxu0
    %v1470 = vpop.f32.mrf.mxu0
    %1471 = vdwg.mxu0
    %1472 = vst [vmem:[#allocation18] sm:$0xf] %v843
    %v1473 = vpack.c.bf16 %v1466, %v1466
    %v1474 = vpack.c.bf16 %v1468, %v1468
    %v1477 = vunpack.c.l.b16 %v1473
    %v1478 = vunpack.c.l.b16 %v1474
    %v1479 = vpack.c.b16 %v1478, %v1477
    %1481 = vst [vmem:[#allocation17] sm:$0xff] %v1479
    // Predicated region
    $region106: #{tpu_custom_call.1} parent=1 // pred_check
      _
    $region107: #{tpu_custom_call.1} parent=1 // pred_check_branch
      %1483 = sbr.rel (0) target = $region109
    $region108: #{tpu_custom_call.1} parent=1 // pred_region
      %s1485 = ssub.s32 128, 128
      %1486 = vsyncadd [#allocation4], %s1485
      %s1488 = sshll.u32 [#allocation17], 4
      %s1489 = int_to_ptr.vmem [resolvable:$true] %s1488
      %1491 = dma.vmem_to_hbm [thread:$0]  %s1489, 128, %s17, [#allocation4]
    $region109: #{tpu_custom_call.1} parent=1 // pred_fallthru
      _
    // Predicated region
    $region110: #{tpu_custom_call.1} parent=1 // pred_check
      _
    $region111: #{tpu_custom_call.1} parent=1 // pred_check_branch
      %1493 = sbr.rel (0) target = $region113
    $region112: #{tpu_custom_call.1} parent=1 // pred_region
      %s1495 = ssub.s32 64, 64
      %1496 = vsyncadd [#allocation19], %s1495
      %s1498 = sshll.u32 [#allocation18], 4
      %s1499 = int_to_ptr.vmem [resolvable:$true] %s1498
      %1501 = dma.vmem_to_hbm [thread:$0]  %s1499, 64, %s18, [#allocation19]
    $region113: #{tpu_custom_call.1} parent=1 // pred_fallthru
      _
    // Predicated region
    $region114: #{tpu_custom_call.1} parent=1 // pred_check
      _
    $region115: #{tpu_custom_call.1} parent=1 // pred_check_branch
      %1503 = sbr.rel (0) target = $region117
    $region116: #{tpu_custom_call.1} parent=1 // pred_region
      %1504 = dma.done [#allocation4], 128
    $region117: #{tpu_custom_call.1} parent=1 // pred_fallthru
      _
    // Predicated region
    $region118: #{tpu_custom_call.1} parent=1 // pred_check
      _
    $region119: #{tpu_custom_call.1} parent=1 // pred_check_branch
      %1506 = sbr.rel (0) target = $region121
    $region120: #{tpu_custom_call.1} parent=1 // pred_region
      %1507 = dma.done [#allocation19], 64
    $region121: #{tpu_custom_call.1} parent=1 // pred_fallthru
      _
    %1508 = vsyncpa [#allocation3], 1
    %1509 = vsyncpa [#allocation6], 1
    %1510 = vsyncpa [#allocation9], 1
    %1511 = vsyncpa [#allocation12], 1
    %1512 = vsyncpa [#allocation15], 1
    %1513 = vsyncpa [#allocation4], 1
    %1514 = vsyncpa [#allocation19], 1

</llo_original>
